<compile_context>
chip_gen: v7x
topology: tpu7x:2x2x1
jax: 0.10.0
libtpu: 0.0.40
codegen_flags: <defaults>
</compile_context>

<pallas_src>
import math

import numpy as np
import jax
import jax.numpy as jnp
from jax.experimental import pallas as pl
from jax.experimental.pallas import tpu as pltpu

# ----------------------------- model constants -----------------------------
B = 2            # batch
C_IN = 4         # input channels
S = 16           # spatial size (H = W)
OC1, OC2 = 8, 16
OH1, OW1 = 16, 16
OH2, OW2 = 8, 8          # conv2 stride 2
STATE_DIM = 32
HID = 64
ACTION_DIM = 4
LANES = 128              # OW1*OC1 == OW2*OC2 == 2*HID == 128 -> full lane tiles

VALUE_LANE = 64          # packed-head lane holding the critic value
LOGP_LANE = 127          # packed-output lane holding log_prob (and logc in bh3)

# consts slab row indices
_R_B1, _R_B2, _R_FCB, _R_BH1, _R_BH2, _R_BH3, _R_STD, _R_IVAR = range(8)


# ------------------------------- the kernel --------------------------------
def _actor_critic_kernel(x_ref, w1_ref, w2_ref, fcw_ref, whs_ref,
                         sel2_ref, consts_ref, eps_ref, o_ref, h2_scr):
    """One grid step == one block of B_BLK samples; whole forward pass fused."""
    f32 = jnp.float32
    bb = o_ref.shape[0]          # samples per block
    r1 = bb * OH1                # conv1 rows in this block

    b1 = consts_ref[_R_B1:_R_B1 + 1, :]
    b2 = consts_ref[_R_B2:_R_B2 + 1, :]
    fcb = consts_ref[_R_FCB:_R_FCB + 1, :]
    bh1 = consts_ref[_R_BH1:_R_BH1 + 1, :]
    bh2 = consts_ref[_R_BH2:_R_BH2 + 1, :]
    bh3 = consts_ref[_R_BH3:_R_BH3 + 1, :]
    std = consts_ref[_R_STD:_R_STD + 1, :]       # sqrt(var), 0 in padded lanes
    ivar = consts_ref[_R_IVAR:_R_IVAR + 1, :]    # 1/var,     0 in padded lanes

    x = x_ref[...]                               # [bb*16, W*C = 64], C minor

    # ---- conv1 (3x3, stride 1, pad 1): 3 MXU passes + sublane rolls --------
    y0 = jnp.dot(x, w1_ref[0], preferred_element_type=f32)   # [bb*16, 128]
    y1 = jnp.dot(x, w1_ref[1], preferred_element_type=f32)
    y2 = jnp.dot(x, w1_ref[2], preferred_element_type=f32)
    r_loc = jax.lax.broadcasted_iota(jnp.int32, (r1, 1), 0) & (OH1 - 1)
    m_top = (r_loc != 0).astype(f32)             # zero pad row above sample
    m_bot = (r_loc != OH1 - 1).astype(f32)       # zero pad row below sample
    top = pltpu.roll(y0, shift=1, axis=0) * m_top        # row g <- y0[g-1]
    bot = pltpu.roll(y2, shift=r1 - 1, axis=0) * m_bot    # row g <- y2[g+1]
    h1 = jnp.maximum(y1 + top + bot + b1, 0.0)            # [bb*16, 128]

    # ---- conv2 (3x3, stride 2, pad 1): precomputed block-diag row gather ---
    # sel2[ki] also reorders output rows to oh-major: out row = oh*bb + b.
    h2 = jnp.zeros((bb * OH2, LANES), f32)
    for ki in range(3):
        g = jnp.dot(sel2_ref[ki], h1, preferred_element_type=f32)   # [bb*8,128]
        h2 = h2 + jnp.dot(g, w2_ref[ki], preferred_element_type=f32)
    h2_scr[...] = jnp.maximum(h2 + b2, 0.0)      # stage in VMEM for row slices

    # ---- flatten + fc: 8 static row-slices + [bb,128]x[128,128] passes -----
    feat = jnp.zeros((bb, LANES), f32)
    for oh in range(OH2):
        feat = feat + jnp.dot(h2_scr[oh * bb:(oh + 1) * bb, :], fcw_ref[oh],
                              preferred_element_type=f32)
    feat = jnp.maximum(feat + fcb, 0.0)          # [bb, 128], real lanes 0:32

    # ---- actor & critic MLPs, packed side by side in 128 lanes -------------
    h = jnp.tanh(jnp.dot(feat, whs_ref[0], preferred_element_type=f32) + bh1)
    h = jnp.tanh(jnp.dot(h, whs_ref[1], preferred_element_type=f32) + bh2)
    out3 = jnp.dot(h, whs_ref[2], preferred_element_type=f32) + bh3
    lane = jax.lax.broadcasted_iota(jnp.int32, (1, LANES), 1)
    # tanh only on the actor half; critic value (lane 64) and logc (lane 127)
    # stay linear.
    out3 = jnp.where(lane < VALUE_LANE, jnp.tanh(out3), out3)

    # ---- diagonal Gaussian: sample + log_prob (all constants precomputed) --
    noise = std * eps_ref[...]                   # std padded lanes are 0 -> safe
    sampled = out3 + noise                       # lane 127 already holds logc
    quad = jnp.sum(noise * noise * ivar, axis=-1, keepdims=True)     # [bb, 1]
    o_ref[...] = sampled + jnp.where(lane == LOGP_LANE, -0.5 * quad, 0.0)


# --------------------------- weight packing (init) --------------------------
def _pack_conv(w_oihw, bias, in_w, out_w, stride, pad=1):
    """Fold the (kj, W, C) part of a 3x3 conv (incl. padding & stride) into
    per-ki matmul weights for activations laid out as [H, W*C] (C minor)."""
    OC, IC, KH, KW = w_oihw.shape
    t = np.zeros((KW, in_w, out_w), np.float32)     # t[kj, wj, ow]
    for kj in range(KW):
        for ow in range(out_w):
            wj = ow * stride + kj - pad
            if 0 <= wj < in_w:
                t[kj, wj, ow] = 1.0
    # big[ki, wj*IC+ic, ow*OC+oc] = sum_kj t[kj,wj,ow] * w[oc,ic,ki,kj]
    big = jnp.einsum("kwo,cihk->hwioc", jnp.asarray(t), w_oihw)
    big = big.reshape(KH, in_w * IC, out_w * OC).astype(jnp.float32)
    b_row = jnp.tile(bias, out_w)[None, :].astype(jnp.float32)        # [1,out_w*OC]
    return big, b_row


def _pack_fc(fc_w, fc_b):
    """fc_w acts on the PyTorch NCHW flatten; permute ONCE to the kernel's
    [oh, ow*OC2+oc] layout and pad the output dim to 128 lanes."""
    w = fc_w.reshape(OC2, OH2, OW2, STATE_DIM).transpose(1, 2, 0, 3)   # [oh,ow,oc,d]
    w = w.reshape(OH2, OW2 * OC2, STATE_DIM)
    w = jnp.pad(w, ((0, 0), (0, 0), (0, LANES - STATE_DIM))).astype(jnp.float32)
    b = jnp.pad(fc_b.reshape(1, STATE_DIM),
                ((0, 0), (0, LANES - STATE_DIM))).astype(jnp.float32)
    return w, b


def _pack_heads(p, logc):
    """Pack actor (lanes 0:64) and critic (lanes 64:128) MLPs side by side.
    The Gaussian log-normalizer logc is folded into bh3 lane LOGP_LANE."""
    wh1 = jnp.zeros((LANES, LANES), jnp.float32)
    wh1 = wh1.at[:STATE_DIM, :HID].set(p["a1_w"]).at[:STATE_DIM, HID:].set(p["v1_w"])
    bh1 = jnp.concatenate([p["a1_b"], p["v1_b"]], axis=1)

    wh2 = jnp.zeros((LANES, LANES), jnp.float32)
    wh2 = wh2.at[:HID, :HID].set(p["a2_w"]).at[HID:, HID:].set(p["v2_w"])
    bh2 = jnp.concatenate([p["a2_b"], p["v2_b"]], axis=1)

    wh3 = jnp.zeros((LANES, LANES), jnp.float32)
    wh3 = wh3.at[:HID, :ACTION_DIM].set(p["a3_w"])
    wh3 = wh3.at[HID:, VALUE_LANE:VALUE_LANE + 1].set(p["v3_w"])
    bh3 = jnp.zeros((1, LANES), jnp.float32)
    bh3 = bh3.at[0, :ACTION_DIM].set(p["a3_b"][0])
    bh3 = bh3.at[0, VALUE_LANE].set(p["v3_b"][0, 0])
    bh3 = bh3.at[0, LOGP_LANE].set(logc)       # Gaussian log-normalizer
    whs = jnp.stack([wh1, wh2, wh3], axis=0)
    return whs, bh1, bh2, bh3


def init_params(key):
    ks = jax.random.split(key, 12)
    sc = 0.1
    rnd = lambda k, shape: (sc * jax.random.normal(k, shape)).astype(jnp.float32)
    flat = OC2 * OH2 * OW2
    return {
        "c1_w": rnd(ks[0], (OC1, C_IN, 3, 3)),  "c1_b": rnd(ks[1], (OC1,)),
        "c2_w": rnd(ks[2], (OC2, OC1, 3, 3)),   "c2_b": rnd(ks[3], (OC2,)),
        "fc_w": rnd(ks[4], (flat, STATE_DIM)),  "fc_b": rnd(ks[5], (1, STATE_DIM)),
        "a1_w": rnd(ks[6], (STATE_DIM, HID)),   "a1_b": jnp.zeros((1, HID), jnp.float32),
        "a2_w": rnd(ks[7], (HID, HID)),         "a2_b": jnp.zeros((1, HID), jnp.float32),
        "a3_w": rnd(ks[8], (HID, ACTION_DIM)),  "a3_b": jnp.zeros((1, ACTION_DIM), jnp.float32),
        "v1_w": rnd(ks[9], (STATE_DIM, HID)),   "v1_b": jnp.zeros((1, HID), jnp.float32),
        "v2_w": rnd(ks[10], (HID, HID)),        "v2_b": jnp.zeros((1, HID), jnp.float32),
        "v3_w": rnd(ks[11], (HID, 1)),          "v3_b": jnp.zeros((1, 1), jnp.float32),
    }


def pack_params(raw, action_var):
    w1, b1 = _pack_conv(raw["c1_w"], raw["c1_b"], in_w=S, out_w=OW1, stride=1)
    w2, b2 = _pack_conv(raw["c2_w"], raw["c2_b"], in_w=OW1, out_w=OW2, stride=2)
    fcw, fcb = _pack_fc(raw["fc_w"], raw["fc_b"])
    # hoisted Gaussian log-normalizer: -0.5*(sum(log var) + A*log(2*pi))
    logc = -0.5 * (jnp.sum(jnp.log(action_var)) + ACTION_DIM * math.log(2.0 * math.pi))
    whs, bh1, bh2, bh3 = _pack_heads(raw, logc)
    std_row = jnp.zeros((1, LANES), jnp.float32).at[0, :ACTION_DIM].set(
        jnp.sqrt(action_var))
    ivar_row = jnp.zeros((1, LANES), jnp.float32).at[0, :ACTION_DIM].set(
        1.0 / action_var)
    # single [8,128] constant slab: b1, b2, fcb, bh1, bh2, bh3, std, inv_var
    consts = jnp.concatenate([b1, b2, fcb, bh1, bh2, bh3, std_row, ivar_row],
                             axis=0).astype(jnp.float32)
    return dict(w1=w1, w2=w2, fcw=fcw, whs=whs, consts=consts)


def _build_sel2(bb):
    """Block-diagonal stride-2 row gather for conv2; output rows are oh-major
    (row = oh*bb + b) so the fc stage can use contiguous static slices."""
    sel = np.zeros((3, bb * OH2, bb * OH1), np.float32)
    for ki in range(3):
        for b in range(bb):
            for oh in range(OH2):
                ih = 2 * oh + ki - 1
                if 0 <= ih < OH1:
                    sel[ki, oh * bb + b, b * OH1 + ih] = 1.0
    return jnp.asarray(sel)


# ------------------------------- act() wrapper ------------------------------
@jax.jit
def actor_critic_act(packed, state_nchw, eps):
    bsz = state_nchw.shape[0]
    bb = bsz if bsz <= 8 else 8          # samples per grid step
    assert bsz % bb == 0
    n_blocks = bsz // bb

    # NCHW -> [B*H, W*C] (channels minor): one-time layout plumbing.
    x = state_nchw.transpose(0, 2, 3, 1).reshape(bsz * S, S * C_IN)
    eps_pad = jnp.zeros((bsz, LANES), jnp.float32).at[:, :ACTION_DIM].set(eps)
    sel2 = _build_sel2(bb)

    w_map2 = lambda i: (0, 0)
    w_map3 = lambda i: (0, 0, 0)
    in_specs = [
        pl.BlockSpec((bb * S, S * C_IN), lambda i: (i, 0)),     # x   (per block)
        pl.BlockSpec(packed["w1"].shape, w_map3),               # conv1 weights
        pl.BlockSpec(packed["w2"].shape, w_map3),               # conv2 weights
        pl.BlockSpec(packed["fcw"].shape, w_map3),              # fc weights
        pl.BlockSpec(packed["whs"].shape, w_map3),              # head weights
        pl.BlockSpec(sel2.shape, w_map3),                       # conv2 gather
        pl.BlockSpec(packed["consts"].shape, w_map2),           # [8,128] consts
        pl.BlockSpec((bb, LANES), lambda i: (i, 0)),            # eps (per block)
    ]
    out = pl.pallas_call(
        _actor_critic_kernel,
        out_shape=jax.ShapeDtypeStruct((bsz, LANES), jnp.float32),
        grid=(n_blocks,),
        in_specs=in_specs,
        out_specs=pl.BlockSpec((bb, LANES), lambda i: (i, 0)),
        scratch_shapes=[pltpu.VMEM((bb * OH2, LANES), jnp.float32)],
        compiler_params=pltpu.CompilerParams(dimension_semantics=("parallel",)),
    )(x, packed["w1"], packed["w2"], packed["fcw"], packed["whs"],
      sel2, packed["consts"], eps_pad)

    action = out[:, :ACTION_DIM]
    action_logprob = out[:, LOGP_LANE]
    state_val = out[:, VALUE_LANE:VALUE_LANE + 1]
    return action, action_logprob, state_val


# --------------------------- pure-JAX reference -----------------------------
@jax.jit
def reference_act(raw, action_var, state_nchw, eps):
    hp = jax.lax.Precision.HIGHEST
    dn = ("NCHW", "OIHW", "NCHW")
    mm = lambda a, b: jnp.dot(a, b, precision=hp)
    h = jax.lax.conv_general_dilated(state_nchw, raw["c1_w"], (1, 1),
                                     ((1, 1), (1, 1)), dimension_numbers=dn,
                                     precision=hp)
    h = jax.nn.relu(h + raw["c1_b"].reshape(1, OC1, 1, 1))
    h = jax.lax.conv_general_dilated(h, raw["c2_w"], (2, 2),
                                     ((1, 1), (1, 1)), dimension_numbers=dn,
                                     precision=hp)
    h = jax.nn.relu(h + raw["c2_b"].reshape(1, OC2, 1, 1))
    h = h.reshape(h.shape[0], -1)                               # NCHW flatten
    feat = jax.nn.relu(mm(h, raw["fc_w"]) + raw["fc_b"])
    a = jnp.tanh(mm(feat, raw["a1_w"]) + raw["a1_b"])
    a = jnp.tanh(mm(a, raw["a2_w"]) + raw["a2_b"])
    mean = jnp.tanh(mm(a, raw["a3_w"]) + raw["a3_b"])
    v = jnp.tanh(mm(feat, raw["v1_w"]) + raw["v1_b"])
    v = jnp.tanh(mm(v, raw["v2_w"]) + raw["v2_b"])
    value = mm(v, raw["v3_w"]) + raw["v3_b"]
    action = mean + jnp.sqrt(action_var)[None, :] * eps
    d = action - mean
    quad = jnp.sum(d * d / action_var[None, :], axis=-1)
    logp = -0.5 * (quad + jnp.sum(jnp.log(action_var))
                   + ACTION_DIM * math.log(2.0 * math.pi))
    return action, logp, value


# ----------------------------------- main ------------------------------------
if __name__ == "__main__":
    key = jax.random.PRNGKey(0)
    k_param, k_state, k_eps = jax.random.split(key, 3)

    raw = init_params(k_param)
    action_std_init = 0.6
    action_var = jnp.full((ACTION_DIM,), action_std_init * action_std_init,
                          dtype=jnp.float32)
    packed = pack_params(raw, action_var)

    state = jax.random.normal(k_state, (B, C_IN, S, S), dtype=jnp.float32)
    eps = jax.random.normal(k_eps, (B, ACTION_DIM), dtype=jnp.float32)

    action, action_logprob, state_val = actor_critic_act(packed, state, eps)
    jax.block_until_ready((action, action_logprob, state_val))

    assert action.shape == (B, ACTION_DIM)
    assert action_logprob.shape == (B,)
    assert state_val.shape == (B, 1)

    # correctness check against a plain-JAX reference of the same forward pass
    ref_a, ref_lp, ref_v = reference_act(raw, action_var, state, eps)
    err = max(float(jnp.max(jnp.abs(action - ref_a))),
              float(jnp.max(jnp.abs(action_logprob - ref_lp))),
              float(jnp.max(jnp.abs(state_val - ref_v))))
    assert err < 2e-2, f"kernel/reference mismatch, max abs err = {err}"

    print("KERNEL_OK")
</pallas_src>

<mosaic_0001>
module attributes {stable_mosaic.version = 11 : i64} {
  func.func @_actor_critic_kernel(%arg0: i32, %arg1: memref<32x64xf32, #tpu.memory_space<vmem>>, %arg2: memref<3x64x128xf32, #tpu.memory_space<vmem>>, %arg3: memref<3x128x128xf32, #tpu.memory_space<vmem>>, %arg4: memref<8x128x128xf32, #tpu.memory_space<vmem>>, %arg5: memref<3x128x128xf32, #tpu.memory_space<vmem>>, %arg6: memref<3x16x32xf32, #tpu.memory_space<vmem>>, %arg7: memref<8x128xf32, #tpu.memory_space<vmem>>, %arg8: memref<2x128xf32, #tpu.memory_space<vmem>>, %arg9: memref<2x128xf32, #tpu.memory_space<vmem>>, %arg10: memref<16x128xf32, #tpu.memory_space<vmem>>) attributes {dimension_semantics = [#tpu.dimension_semantics<parallel>], iteration_bounds = array<i64: 1>, scalar_prefetch = 0 : i64, scratch_operands = 1 : i64, tpu.core_type = #tpu.core_type<tc>, window_params = [{transform_indices = @transform_0, window_bounds = array<i64: 32, 64>}, {pipeline_mode = #tpu.pipeline_mode<synchronous>, transform_indices = @transform_1, window_bounds = array<i64: 3, 64, 128>}, {pipeline_mode = #tpu.pipeline_mode<synchronous>, transform_indices = @transform_2, window_bounds = array<i64: 3, 128, 128>}, {pipeline_mode = #tpu.pipeline_mode<synchronous>, transform_indices = @transform_3, window_bounds = array<i64: 8, 128, 128>}, {pipeline_mode = #tpu.pipeline_mode<synchronous>, transform_indices = @transform_4, window_bounds = array<i64: 3, 128, 128>}, {pipeline_mode = #tpu.pipeline_mode<synchronous>, transform_indices = @transform_5, window_bounds = array<i64: 3, 16, 32>}, {pipeline_mode = #tpu.pipeline_mode<synchronous>, transform_indices = @transform_6, window_bounds = array<i64: 8, 128>}, {transform_indices = @transform_7, window_bounds = array<i64: 2, 128>}, {transform_indices = @transform_8, window_bounds = array<i64: 2, 128>}]} {
    %c0 = arith.constant 0 : index
    %c0_0 = arith.constant 0 : index
    %0 = vector.load %arg7[%c0, %c0_0] : memref<8x128xf32, #tpu.memory_space<vmem>>, vector<1x128xf32>
    %c1 = arith.constant 1 : index
    %c0_1 = arith.constant 0 : index
    %1 = vector.load %arg7[%c1, %c0_1] : memref<8x128xf32, #tpu.memory_space<vmem>>, vector<1x128xf32>
    %c2 = arith.constant 2 : index
    %c0_2 = arith.constant 0 : index
    %2 = vector.load %arg7[%c2, %c0_2] : memref<8x128xf32, #tpu.memory_space<vmem>>, vector<1x128xf32>
    %c3 = arith.constant 3 : index
    %c0_3 = arith.constant 0 : index
    %3 = vector.load %arg7[%c3, %c0_3] : memref<8x128xf32, #tpu.memory_space<vmem>>, vector<1x128xf32>
    %c4 = arith.constant 4 : index
    %c0_4 = arith.constant 0 : index
    %4 = vector.load %arg7[%c4, %c0_4] : memref<8x128xf32, #tpu.memory_space<vmem>>, vector<1x128xf32>
    %c5 = arith.constant 5 : index
    %c0_5 = arith.constant 0 : index
    %5 = vector.load %arg7[%c5, %c0_5] : memref<8x128xf32, #tpu.memory_space<vmem>>, vector<1x128xf32>
    %c6 = arith.constant 6 : index
    %c0_6 = arith.constant 0 : index
    %6 = vector.load %arg7[%c6, %c0_6] : memref<8x128xf32, #tpu.memory_space<vmem>>, vector<1x128xf32>
    %c7 = arith.constant 7 : index
    %c0_7 = arith.constant 0 : index
    %7 = vector.load %arg7[%c7, %c0_7] : memref<8x128xf32, #tpu.memory_space<vmem>>, vector<1x128xf32>
    %c0_8 = arith.constant 0 : index
    %c0_9 = arith.constant 0 : index
    %8 = vector.load %arg1[%c0_8, %c0_9] : memref<32x64xf32, #tpu.memory_space<vmem>>, vector<32x64xf32>
    %c0_10 = arith.constant 0 : index
    %c0_11 = arith.constant 0 : index
    %c0_12 = arith.constant 0 : index
    %9 = vector.load %arg2[%c0_10, %c0_11, %c0_12] : memref<3x64x128xf32, #tpu.memory_space<vmem>>, vector<1x64x128xf32>
    %10 = vector.shape_cast %9 : vector<1x64x128xf32> to vector<64x128xf32>
    %cst = arith.constant dense<0.000000e+00> : vector<32x128xf32>
    %11 = tpu.matmul %8, %10, %cst {dimension_numbers = #tpu.dot_dimension_numbers<[1], [0], [0], [1], [0, 0, 1, 1], [], []>} : vector<32x64xf32>, vector<64x128xf32>, vector<32x128xf32> -> vector<32x128xf32>
    %c1_13 = arith.constant 1 : index
    %c0_14 = arith.constant 0 : index
    %c0_15 = arith.constant 0 : index
    %12 = vector.load %arg2[%c1_13, %c0_14, %c0_15] : memref<3x64x128xf32, #tpu.memory_space<vmem>>, vector<1x64x128xf32>
    %13 = vector.shape_cast %12 : vector<1x64x128xf32> to vector<64x128xf32>
    %cst_16 = arith.constant dense<0.000000e+00> : vector<32x128xf32>
    %14 = tpu.matmul %8, %13, %cst_16 {dimension_numbers = #tpu.dot_dimension_numbers<[1], [0], [0], [1], [0, 0, 1, 1], [], []>} : vector<32x64xf32>, vector<64x128xf32>, vector<32x128xf32> -> vector<32x128xf32>
    %c2_17 = arith.constant 2 : index
    %c0_18 = arith.constant 0 : index
    %c0_19 = arith.constant 0 : index
    %15 = vector.load %arg2[%c2_17, %c0_18, %c0_19] : memref<3x64x128xf32, #tpu.memory_space<vmem>>, vector<1x64x128xf32>
    %16 = vector.shape_cast %15 : vector<1x64x128xf32> to vector<64x128xf32>
    %cst_20 = arith.constant dense<0.000000e+00> : vector<32x128xf32>
    %17 = tpu.matmul %8, %16, %cst_20 {dimension_numbers = #tpu.dot_dimension_numbers<[1], [0], [0], [1], [0, 0, 1, 1], [], []>} : vector<32x64xf32>, vector<64x128xf32>, vector<32x128xf32> -> vector<32x128xf32>
    %18 = tpu.iota {dimensions = array<i32: 0>} : vector<32x1xi32>
    %c15_i32 = arith.constant 15 : i32
    %19 = vector.broadcast %c15_i32 : i32 to vector<32x1xi32>
    %20 = arith.andi %18, %19 : vector<32x1xi32>
    %c0_i32 = arith.constant 0 : i32
    %21 = vector.broadcast %c0_i32 : i32 to vector<32x1xi32>
    %22 = arith.cmpi ne, %20, %21 : vector<32x1xi32>
    %23 = arith.extui %22 : vector<32x1xi1> to vector<32x1xi32>
    %24 = arith.sitofp %23 : vector<32x1xi32> to vector<32x1xf32>
    %c15_i32_21 = arith.constant 15 : i32
    %25 = vector.broadcast %c15_i32_21 : i32 to vector<32x1xi32>
    %26 = arith.cmpi ne, %20, %25 : vector<32x1xi32>
    %27 = arith.extui %26 : vector<32x1xi1> to vector<32x1xi32>
    %28 = arith.sitofp %27 : vector<32x1xi32> to vector<32x1xf32>
    %c1_i32 = arith.constant 1 : i32
    %29 = tpu.dynamic_rotate %11 by %c1_i32 dim 0 : vector<32x128xf32>, i32 -> vector<32x128xf32>
    %30 = vector.broadcast %24 : vector<32x1xf32> to vector<32x128xf32>
    %31 = arith.mulf %29, %30 : vector<32x128xf32>
    %c31_i32 = arith.constant 31 : i32
    %32 = tpu.dynamic_rotate %17 by %c31_i32 dim 0 : vector<32x128xf32>, i32 -> vector<32x128xf32>
    %33 = vector.broadcast %28 : vector<32x1xf32> to vector<32x128xf32>
    %34 = arith.mulf %32, %33 : vector<32x128xf32>
    %35 = arith.addf %14, %31 : vector<32x128xf32>
    %36 = arith.addf %35, %34 : vector<32x128xf32>
    %37 = vector.broadcast %0 : vector<1x128xf32> to vector<32x128xf32>
    %38 = arith.addf %36, %37 : vector<32x128xf32>
    %cst_22 = arith.constant 0.000000e+00 : f32
    %39 = vector.broadcast %cst_22 : f32 to vector<32x128xf32>
    %40 = arith.maximumf %38, %39 : vector<32x128xf32>
    %cst_23 = arith.constant 0.000000e+00 : f32
    %41 = vector.broadcast %cst_23 : f32 to vector<16x128xf32>
    %c0_24 = arith.constant 0 : index
    %c0_25 = arith.constant 0 : index
    %c0_26 = arith.constant 0 : index
    %42 = vector.load %arg6[%c0_24, %c0_25, %c0_26] : memref<3x16x32xf32, #tpu.memory_space<vmem>>, vector<1x16x32xf32>
    %43 = vector.shape_cast %42 : vector<1x16x32xf32> to vector<16x32xf32>
    %cst_27 = arith.constant dense<0.000000e+00> : vector<16x128xf32>
    %44 = tpu.matmul %43, %40, %cst_27 {dimension_numbers = #tpu.dot_dimension_numbers<[1], [0], [0], [1], [0, 0, 1, 1], [], []>} : vector<16x32xf32>, vector<32x128xf32>, vector<16x128xf32> -> vector<16x128xf32>
    %c0_28 = arith.constant 0 : index
    %c0_29 = arith.constant 0 : index
    %c0_30 = arith.constant 0 : index
    %45 = vector.load %arg3[%c0_28, %c0_29, %c0_30] : memref<3x128x128xf32, #tpu.memory_space<vmem>>, vector<1x128x128xf32>
    %46 = vector.shape_cast %45 : vector<1x128x128xf32> to vector<128x128xf32>
    %cst_31 = arith.constant dense<0.000000e+00> : vector<16x128xf32>
    %47 = tpu.matmul %44, %46, %cst_31 {dimension_numbers = #tpu.dot_dimension_numbers<[1], [0], [0], [1], [0, 0, 1, 1], [], []>} : vector<16x128xf32>, vector<128x128xf32>, vector<16x128xf32> -> vector<16x128xf32>
    %48 = arith.addf %41, %47 : vector<16x128xf32>
    %c1_32 = arith.constant 1 : index
    %c0_33 = arith.constant 0 : index
    %c0_34 = arith.constant 0 : index
    %49 = vector.load %arg6[%c1_32, %c0_33, %c0_34] : memref<3x16x32xf32, #tpu.memory_space<vmem>>, vector<1x16x32xf32>
    %50 = vector.shape_cast %49 : vector<1x16x32xf32> to vector<16x32xf32>
    %cst_35 = arith.constant dense<0.000000e+00> : vector<16x128xf32>
    %51 = tpu.matmul %50, %40, %cst_35 {dimension_numbers = #tpu.dot_dimension_numbers<[1], [0], [0], [1], [0, 0, 1, 1], [], []>} : vector<16x32xf32>, vector<32x128xf32>, vector<16x128xf32> -> vector<16x128xf32>
    %c1_36 = arith.constant 1 : index
    %c0_37 = arith.constant 0 : index
    %c0_38 = arith.constant 0 : index
    %52 = vector.load %arg3[%c1_36, %c0_37, %c0_38] : memref<3x128x128xf32, #tpu.memory_space<vmem>>, vector<1x128x128xf32>
    %53 = vector.shape_cast %52 : vector<1x128x128xf32> to vector<128x128xf32>
    %cst_39 = arith.constant dense<0.000000e+00> : vector<16x128xf32>
    %54 = tpu.matmul %51, %53, %cst_39 {dimension_numbers = #tpu.dot_dimension_numbers<[1], [0], [0], [1], [0, 0, 1, 1], [], []>} : vector<16x128xf32>, vector<128x128xf32>, vector<16x128xf32> -> vector<16x128xf32>
    %55 = arith.addf %48, %54 : vector<16x128xf32>
    %c2_40 = arith.constant 2 : index
    %c0_41 = arith.constant 0 : index
    %c0_42 = arith.constant 0 : index
    %56 = vector.load %arg6[%c2_40, %c0_41, %c0_42] : memref<3x16x32xf32, #tpu.memory_space<vmem>>, vector<1x16x32xf32>
    %57 = vector.shape_cast %56 : vector<1x16x32xf32> to vector<16x32xf32>
    %cst_43 = arith.constant dense<0.000000e+00> : vector<16x128xf32>
    %58 = tpu.matmul %57, %40, %cst_43 {dimension_numbers = #tpu.dot_dimension_numbers<[1], [0], [0], [1], [0, 0, 1, 1], [], []>} : vector<16x32xf32>, vector<32x128xf32>, vector<16x128xf32> -> vector<16x128xf32>
    %c2_44 = arith.constant 2 : index
    %c0_45 = arith.constant 0 : index
    %c0_46 = arith.constant 0 : index
    %59 = vector.load %arg3[%c2_44, %c0_45, %c0_46] : memref<3x128x128xf32, #tpu.memory_space<vmem>>, vector<1x128x128xf32>
    %60 = vector.shape_cast %59 : vector<1x128x128xf32> to vector<128x128xf32>
    %cst_47 = arith.constant dense<0.000000e+00> : vector<16x128xf32>
    %61 = tpu.matmul %58, %60, %cst_47 {dimension_numbers = #tpu.dot_dimension_numbers<[1], [0], [0], [1], [0, 0, 1, 1], [], []>} : vector<16x128xf32>, vector<128x128xf32>, vector<16x128xf32> -> vector<16x128xf32>
    %62 = arith.addf %55, %61 : vector<16x128xf32>
    %63 = vector.broadcast %1 : vector<1x128xf32> to vector<16x128xf32>
    %64 = arith.addf %62, %63 : vector<16x128xf32>
    %cst_48 = arith.constant 0.000000e+00 : f32
    %65 = vector.broadcast %cst_48 : f32 to vector<16x128xf32>
    %66 = arith.maximumf %64, %65 : vector<16x128xf32>
    %c0_49 = arith.constant 0 : index
    %c0_50 = arith.constant 0 : index
    %67 = vector.load %arg10[%c0_49, %c0_50] : memref<16x128xf32, #tpu.memory_space<vmem>>, vector<16x128xf32>
    tpu.vector_store %arg10[%c0_49, %c0_50], %66 {strides = array<i32>} : memref<16x128xf32, #tpu.memory_space<vmem>>, vector<16x128xf32>,
    %cst_51 = arith.constant 0.000000e+00 : f32
    %68 = vector.broadcast %cst_51 : f32 to vector<2x128xf32>
    %c0_52 = arith.constant 0 : index
    %c0_53 = arith.constant 0 : index
    %69 = vector.load %arg10[%c0_52, %c0_53] : memref<16x128xf32, #tpu.memory_space<vmem>>, vector<2x128xf32>
    %c0_54 = arith.constant 0 : index
    %c0_55 = arith.constant 0 : index
    %c0_56 = arith.constant 0 : index
    %70 = vector.load %arg4[%c0_54, %c0_55, %c0_56] : memref<8x128x128xf32, #tpu.memory_space<vmem>>, vector<1x128x128xf32>
    %71 = vector.shape_cast %70 : vector<1x128x128xf32> to vector<128x128xf32>
    %cst_57 = arith.constant dense<0.000000e+00> : vector<2x128xf32>
    %72 = tpu.matmul %69, %71, %cst_57 {dimension_numbers = #tpu.dot_dimension_numbers<[1], [0], [0], [1], [0, 0, 1, 1], [], []>} : vector<2x128xf32>, vector<128x128xf32>, vector<2x128xf32> -> vector<2x128xf32>
    %73 = arith.addf %68, %72 : vector<2x128xf32>
    %c2_58 = arith.constant 2 : index
    %c0_59 = arith.constant 0 : index
    %74 = vector.load %arg10[%c2_58, %c0_59] : memref<16x128xf32, #tpu.memory_space<vmem>>, vector<2x128xf32>
    %c1_60 = arith.constant 1 : index
    %c0_61 = arith.constant 0 : index
    %c0_62 = arith.constant 0 : index
    %75 = vector.load %arg4[%c1_60, %c0_61, %c0_62] : memref<8x128x128xf32, #tpu.memory_space<vmem>>, vector<1x128x128xf32>
    %76 = vector.shape_cast %75 : vector<1x128x128xf32> to vector<128x128xf32>
    %cst_63 = arith.constant dense<0.000000e+00> : vector<2x128xf32>
    %77 = tpu.matmul %74, %76, %cst_63 {dimension_numbers = #tpu.dot_dimension_numbers<[1], [0], [0], [1], [0, 0, 1, 1], [], []>} : vector<2x128xf32>, vector<128x128xf32>, vector<2x128xf32> -> vector<2x128xf32>
    %78 = arith.addf %73, %77 : vector<2x128xf32>
    %c4_64 = arith.constant 4 : index
    %c0_65 = arith.constant 0 : index
    %79 = vector.load %arg10[%c4_64, %c0_65] : memref<16x128xf32, #tpu.memory_space<vmem>>, vector<2x128xf32>
    %c2_66 = arith.constant 2 : index
    %c0_67 = arith.constant 0 : index
    %c0_68 = arith.constant 0 : index
    %80 = vector.load %arg4[%c2_66, %c0_67, %c0_68] : memref<8x128x128xf32, #tpu.memory_space<vmem>>, vector<1x128x128xf32>
    %81 = vector.shape_cast %80 : vector<1x128x128xf32> to vector<128x128xf32>
    %cst_69 = arith.constant dense<0.000000e+00> : vector<2x128xf32>
    %82 = tpu.matmul %79, %81, %cst_69 {dimension_numbers = #tpu.dot_dimension_numbers<[1], [0], [0], [1], [0, 0, 1, 1], [], []>} : vector<2x128xf32>, vector<128x128xf32>, vector<2x128xf32> -> vector<2x128xf32>
    %83 = arith.addf %78, %82 : vector<2x128xf32>
    %c6_70 = arith.constant 6 : index
    %c0_71 = arith.constant 0 : index
    %84 = vector.load %arg10[%c6_70, %c0_71] : memref<16x128xf32, #tpu.memory_space<vmem>>, vector<2x128xf32>
    %c3_72 = arith.constant 3 : index
    %c0_73 = arith.constant 0 : index
    %c0_74 = arith.constant 0 : index
    %85 = vector.load %arg4[%c3_72, %c0_73, %c0_74] : memref<8x128x128xf32, #tpu.memory_space<vmem>>, vector<1x128x128xf32>
    %86 = vector.shape_cast %85 : vector<1x128x128xf32> to vector<128x128xf32>
    %cst_75 = arith.constant dense<0.000000e+00> : vector<2x128xf32>
    %87 = tpu.matmul %84, %86, %cst_75 {dimension_numbers = #tpu.dot_dimension_numbers<[1], [0], [0], [1], [0, 0, 1, 1], [], []>} : vector<2x128xf32>, vector<128x128xf32>, vector<2x128xf32> -> vector<2x128xf32>
    %88 = arith.addf %83, %87 : vector<2x128xf32>
    %c8 = arith.constant 8 : index
    %c0_76 = arith.constant 0 : index
    %89 = vector.load %arg10[%c8, %c0_76] : memref<16x128xf32, #tpu.memory_space<vmem>>, vector<2x128xf32>
    %c4_77 = arith.constant 4 : index
    %c0_78 = arith.constant 0 : index
    %c0_79 = arith.constant 0 : index
    %90 = vector.load %arg4[%c4_77, %c0_78, %c0_79] : memref<8x128x128xf32, #tpu.memory_space<vmem>>, vector<1x128x128xf32>
    %91 = vector.shape_cast %90 : vector<1x128x128xf32> to vector<128x128xf32>
    %cst_80 = arith.constant dense<0.000000e+00> : vector<2x128xf32>
    %92 = tpu.matmul %89, %91, %cst_80 {dimension_numbers = #tpu.dot_dimension_numbers<[1], [0], [0], [1], [0, 0, 1, 1], [], []>} : vector<2x128xf32>, vector<128x128xf32>, vector<2x128xf32> -> vector<2x128xf32>
    %93 = arith.addf %88, %92 : vector<2x128xf32>
    %c10 = arith.constant 10 : index
    %c0_81 = arith.constant 0 : index
    %94 = vector.load %arg10[%c10, %c0_81] : memref<16x128xf32, #tpu.memory_space<vmem>>, vector<2x128xf32>
    %c5_82 = arith.constant 5 : index
    %c0_83 = arith.constant 0 : index
    %c0_84 = arith.constant 0 : index
    %95 = vector.load %arg4[%c5_82, %c0_83, %c0_84] : memref<8x128x128xf32, #tpu.memory_space<vmem>>, vector<1x128x128xf32>
    %96 = vector.shape_cast %95 : vector<1x128x128xf32> to vector<128x128xf32>
    %cst_85 = arith.constant dense<0.000000e+00> : vector<2x128xf32>
    %97 = tpu.matmul %94, %96, %cst_85 {dimension_numbers = #tpu.dot_dimension_numbers<[1], [0], [0], [1], [0, 0, 1, 1], [], []>} : vector<2x128xf32>, vector<128x128xf32>, vector<2x128xf32> -> vector<2x128xf32>
    %98 = arith.addf %93, %97 : vector<2x128xf32>
    %c12 = arith.constant 12 : index
    %c0_86 = arith.constant 0 : index
    %99 = vector.load %arg10[%c12, %c0_86] : memref<16x128xf32, #tpu.memory_space<vmem>>, vector<2x128xf32>
    %c6_87 = arith.constant 6 : index
    %c0_88 = arith.constant 0 : index
    %c0_89 = arith.constant 0 : index
    %100 = vector.load %arg4[%c6_87, %c0_88, %c0_89] : memref<8x128x128xf32, #tpu.memory_space<vmem>>, vector<1x128x128xf32>
    %101 = vector.shape_cast %100 : vector<1x128x128xf32> to vector<128x128xf32>
    %cst_90 = arith.constant dense<0.000000e+00> : vector<2x128xf32>
    %102 = tpu.matmul %99, %101, %cst_90 {dimension_numbers = #tpu.dot_dimension_numbers<[1], [0], [0], [1], [0, 0, 1, 1], [], []>} : vector<2x128xf32>, vector<128x128xf32>, vector<2x128xf32> -> vector<2x128xf32>
    %103 = arith.addf %98, %102 : vector<2x128xf32>
    %c14 = arith.constant 14 : index
    %c0_91 = arith.constant 0 : index
    %104 = vector.load %arg10[%c14, %c0_91] : memref<16x128xf32, #tpu.memory_space<vmem>>, vector<2x128xf32>
    %c7_92 = arith.constant 7 : index
    %c0_93 = arith.constant 0 : index
    %c0_94 = arith.constant 0 : index
    %105 = vector.load %arg4[%c7_92, %c0_93, %c0_94] : memref<8x128x128xf32, #tpu.memory_space<vmem>>, vector<1x128x128xf32>
    %106 = vector.shape_cast %105 : vector<1x128x128xf32> to vector<128x128xf32>
    %cst_95 = arith.constant dense<0.000000e+00> : vector<2x128xf32>
    %107 = tpu.matmul %104, %106, %cst_95 {dimension_numbers = #tpu.dot_dimension_numbers<[1], [0], [0], [1], [0, 0, 1, 1], [], []>} : vector<2x128xf32>, vector<128x128xf32>, vector<2x128xf32> -> vector<2x128xf32>
    %108 = arith.addf %103, %107 : vector<2x128xf32>
    %109 = vector.broadcast %2 : vector<1x128xf32> to vector<2x128xf32>
    %110 = arith.addf %108, %109 : vector<2x128xf32>
    %cst_96 = arith.constant 0.000000e+00 : f32
    %111 = vector.broadcast %cst_96 : f32 to vector<2x128xf32>
    %112 = arith.maximumf %110, %111 : vector<2x128xf32>
    %c0_97 = arith.constant 0 : index
    %c0_98 = arith.constant 0 : index
    %c0_99 = arith.constant 0 : index
    %113 = vector.load %arg5[%c0_97, %c0_98, %c0_99] : memref<3x128x128xf32, #tpu.memory_space<vmem>>, vector<1x128x128xf32>
    %114 = vector.shape_cast %113 : vector<1x128x128xf32> to vector<128x128xf32>
    %cst_100 = arith.constant dense<0.000000e+00> : vector<2x128xf32>
    %115 = tpu.matmul %112, %114, %cst_100 {dimension_numbers = #tpu.dot_dimension_numbers<[1], [0], [0], [1], [0, 0, 1, 1], [], []>} : vector<2x128xf32>, vector<128x128xf32>, vector<2x128xf32> -> vector<2x128xf32>
    %116 = vector.broadcast %3 : vector<1x128xf32> to vector<2x128xf32>
    %117 = arith.addf %115, %116 : vector<2x128xf32>
    %118 = math.tanh %117 : vector<2x128xf32>
    %c1_101 = arith.constant 1 : index
    %c0_102 = arith.constant 0 : index
    %c0_103 = arith.constant 0 : index
    %119 = vector.load %arg5[%c1_101, %c0_102, %c0_103] : memref<3x128x128xf32, #tpu.memory_space<vmem>>, vector<1x128x128xf32>
    %120 = vector.shape_cast %119 : vector<1x128x128xf32> to vector<128x128xf32>
    %cst_104 = arith.constant dense<0.000000e+00> : vector<2x128xf32>
    %121 = tpu.matmul %118, %120, %cst_104 {dimension_numbers = #tpu.dot_dimension_numbers<[1], [0], [0], [1], [0, 0, 1, 1], [], []>} : vector<2x128xf32>, vector<128x128xf32>, vector<2x128xf32> -> vector<2x128xf32>
    %122 = vector.broadcast %4 : vector<1x128xf32> to vector<2x128xf32>
    %123 = arith.addf %121, %122 : vector<2x128xf32>
    %124 = math.tanh %123 : vector<2x128xf32>
    %c2_105 = arith.constant 2 : index
    %c0_106 = arith.constant 0 : index
    %c0_107 = arith.constant 0 : index
    %125 = vector.load %arg5[%c2_105, %c0_106, %c0_107] : memref<3x128x128xf32, #tpu.memory_space<vmem>>, vector<1x128x128xf32>
    %126 = vector.shape_cast %125 : vector<1x128x128xf32> to vector<128x128xf32>
    %cst_108 = arith.constant dense<0.000000e+00> : vector<2x128xf32>
    %127 = tpu.matmul %124, %126, %cst_108 {dimension_numbers = #tpu.dot_dimension_numbers<[1], [0], [0], [1], [0, 0, 1, 1], [], []>} : vector<2x128xf32>, vector<128x128xf32>, vector<2x128xf32> -> vector<2x128xf32>
    %128 = vector.broadcast %5 : vector<1x128xf32> to vector<2x128xf32>
    %129 = arith.addf %127, %128 : vector<2x128xf32>
    %130 = tpu.iota {dimensions = array<i32: 1>} : vector<1x128xi32>
    %c64_i32 = arith.constant 64 : i32
    %131 = vector.broadcast %c64_i32 : i32 to vector<1x128xi32>
    %132 = arith.cmpi slt, %130, %131 : vector<1x128xi32>
    %133 = math.tanh %129 : vector<2x128xf32>
    %134 = vector.shape_cast %132 : vector<1x128xi1> to vector<1x128xi1>
    %135 = vector.broadcast %134 : vector<1x128xi1> to vector<2x128xi1>
    %136 = arith.select %135, %133, %129 : vector<2x128xi1>, vector<2x128xf32>
    %c0_109 = arith.constant 0 : index
    %c0_110 = arith.constant 0 : index
    %137 = vector.load %arg8[%c0_109, %c0_110] : memref<2x128xf32, #tpu.memory_space<vmem>>, vector<2x128xf32>
    %138 = vector.broadcast %6 : vector<1x128xf32> to vector<2x128xf32>
    %139 = arith.mulf %138, %137 : vector<2x128xf32>
    %140 = arith.addf %136, %139 : vector<2x128xf32>
    %141 = arith.mulf %139, %139 : vector<2x128xf32>
    %142 = vector.broadcast %7 : vector<1x128xf32> to vector<2x128xf32>
    %143 = arith.mulf %141, %142 : vector<2x128xf32>
    %cst_111 = arith.constant dense<0.000000e+00> : vector<2xf32>
    %144 = vector.multi_reduction <add>, %143, %cst_111 [1] : vector<2x128xf32> to vector<2xf32>
    %145 = vector.shape_cast %144 : vector<2xf32> to vector<2x1xf32>
    %c127_i32 = arith.constant 127 : i32
    %146 = vector.broadcast %c127_i32 : i32 to vector<1x128xi32>
    %147 = arith.cmpi eq, %130, %146 : vector<1x128xi32>
    %cst_112 = arith.constant -5.000000e-01 : f32
    %148 = vector.broadcast %cst_112 : f32 to vector<2x1xf32>
    %149 = arith.mulf %148, %145 : vector<2x1xf32>
    %cst_113 = arith.constant 0.000000e+00 : f32
    %150 = vector.shape_cast %147 : vector<1x128xi1> to vector<1x128xi1>
    %151 = vector.broadcast %150 : vector<1x128xi1> to vector<2x128xi1>
    %152 = vector.shape_cast %149 : vector<2x1xf32> to vector<2x1xf32>
    %153 = vector.broadcast %152 : vector<2x1xf32> to vector<2x128xf32>
    %154 = vector.broadcast %cst_113 : f32 to vector<2x128xf32>
    %155 = arith.select %151, %153, %154 : vector<2x128xi1>, vector<2x128xf32>
    %156 = arith.addf %140, %155 : vector<2x128xf32>
    %c0_114 = arith.constant 0 : index
    %c0_115 = arith.constant 0 : index
    %157 = vector.load %arg9[%c0_114, %c0_115] : memref<2x128xf32, #tpu.memory_space<vmem>>, vector<2x128xf32>
    tpu.vector_store %arg9[%c0_114, %c0_115], %156 {strides = array<i32>} : memref<2x128xf32, #tpu.memory_space<vmem>>, vector<2x128xf32>,
    return
  }
  func.func @transform_0(%arg0: i32) -> (i32, i32) {
    %c0_i32 = arith.constant 0 : i32
    %c0_i32_0 = arith.constant 0 : i32
    return %arg0, %c0_i32 : i32, i32
  }
  func.func @transform_1(%arg0: i32) -> (i32, i32, i32) {
    %c0_i32 = arith.constant 0 : i32
    %c0_i32_0 = arith.constant 0 : i32
    %c0_i32_1 = arith.constant 0 : i32
    %c0_i32_2 = arith.constant 0 : i32
    return %c0_i32, %c0_i32_0, %c0_i32_1 : i32, i32, i32
  }
  func.func @transform_2(%arg0: i32) -> (i32, i32, i32) {
    %c0_i32 = arith.constant 0 : i32
    %c0_i32_0 = arith.constant 0 : i32
    %c0_i32_1 = arith.constant 0 : i32
    %c0_i32_2 = arith.constant 0 : i32
    return %c0_i32, %c0_i32_0, %c0_i32_1 : i32, i32, i32
  }
  func.func @transform_3(%arg0: i32) -> (i32, i32, i32) {
    %c0_i32 = arith.constant 0 : i32
    %c0_i32_0 = arith.constant 0 : i32
    %c0_i32_1 = arith.constant 0 : i32
    %c0_i32_2 = arith.constant 0 : i32
    return %c0_i32, %c0_i32_0, %c0_i32_1 : i32, i32, i32
  }
  func.func @transform_4(%arg0: i32) -> (i32, i32, i32) {
    %c0_i32 = arith.constant 0 : i32
    %c0_i32_0 = arith.constant 0 : i32
    %c0_i32_1 = arith.constant 0 : i32
    %c0_i32_2 = arith.constant 0 : i32
    return %c0_i32, %c0_i32_0, %c0_i32_1 : i32, i32, i32
  }
  func.func @transform_5(%arg0: i32) -> (i32, i32, i32) {
    %c0_i32 = arith.constant 0 : i32
    %c0_i32_0 = arith.constant 0 : i32
    %c0_i32_1 = arith.constant 0 : i32
    %c0_i32_2 = arith.constant 0 : i32
    return %c0_i32, %c0_i32_0, %c0_i32_1 : i32, i32, i32
  }
  func.func @transform_6(%arg0: i32) -> (i32, i32) {
    %c0_i32 = arith.constant 0 : i32
    %c0_i32_0 = arith.constant 0 : i32
    %c0_i32_1 = arith.constant 0 : i32
    return %c0_i32, %c0_i32_0 : i32, i32
  }
  func.func @transform_7(%arg0: i32) -> (i32, i32) {
    %c0_i32 = arith.constant 0 : i32
    %c0_i32_0 = arith.constant 0 : i32
    return %arg0, %c0_i32 : i32, i32
  }
  func.func @transform_8(%arg0: i32) -> (i32, i32) {
    %c0_i32 = arith.constant 0 : i32
    %c0_i32_0 = arith.constant 0 : i32
    return %arg0, %c0_i32 : i32, i32
  }
}

</mosaic_0001>

<llo_original>
// kernel: actor_critic_act.1
$region0: #{actor_critic_act.1}
  #allocation0 [shape = 'u32[]', space=smem, size = 0x4, offset = 0x4, fixed_abs, tag = 'smem constant byte address 0x4 - core index']
  #allocation1 [shape = 'u32[144,128]{1,0:T(1,128)}', space=vmem, size = 0x12000, scoped, tag = 'internal scratch']
  #allocation2 [shape = 'f32[16,128]{1,0:T(8,128)}', space=vmem, size = 0x2000, scoped, tag = 'scratch operand']
  %s0 = inlined_call_operand.vmem [shape: f32[32,64], index: 0, kind: input, shape index: {}]
  %s1 = inlined_call_operand.hbm [shape: f32[3,64,128], index: 1, kind: input, shape index: {}]
  %s2 = inlined_call_operand.vmem [shape: f32[3,128,128], index: 2, kind: input, shape index: {}]
  %s3 = inlined_call_operand.hbm [shape: f32[8,128,128], index: 3, kind: input, shape index: {}]
  %s4 = inlined_call_operand.hbm [shape: f32[3,128,128], index: 4, kind: input, shape index: {}]
  %s5 = inlined_call_operand.vmem [shape: f32[3,16,32], index: 5, kind: input, shape index: {}]
  %s6 = inlined_call_operand.vmem [shape: f32[8,128], index: 6, kind: input, shape index: {}]
  %s7 = inlined_call_operand.vmem [shape: f32[2,128], index: 7, kind: input, shape index: {}]
  %s8 = inlined_call_operand.vmem [shape: f32[2,128], index: 8, kind: output, shape index: {}]
  %s9 = sld [smem:[#allocation0]]
  $region54: #{actor_critic_act.1} parent=0
    _
  %s11 = ssub.s32 1, %s9
  %s12 = scalar_select 0, %s11, %s9
  $region1: #{actor_critic_act.1} parent=0
    #allocation3 [shape = 'u8[98304]{0}', space=vmem, size = 0x18000, scoped, tag = 'input window, operand 1, single buffered']
    #allocation4 [shape = 's32[1]{0}', space=sflag, size = 0x4, scoped, tag = 'scoped memory for actor_critic_act.1']
    #allocation5 [shape = 'u8[524288]{0}', space=vmem, size = 0x80000, scoped, tag = 'input window, operand 3, single buffered']
    #allocation6 [shape = 's32[1]{0}', space=sflag, size = 0x4, scoped, tag = 'scoped memory for actor_critic_act.1']
    #allocation7 [shape = 'u8[196608]{0}', space=vmem, size = 0x30000, scoped, tag = 'input window, operand 4, single buffered']
    %13 = vsyncpa [#allocation4], 0
    %14 = vsyncpa [#allocation6], 0
    // Predicated region
    $region2: #{actor_critic_act.1} parent=1 // pred_check
      _
    $region3: #{actor_critic_act.1} parent=1 // pred_check_branch
      %16 = sbr.rel (0) target = $region5
    $region4: #{actor_critic_act.1} parent=1 // pred_region
      _
    $region5: #{actor_critic_act.1} parent=1 // pred_fallthru
      _
    // Predicated region
    $region6: #{actor_critic_act.1} parent=1 // pred_check
      _
    $region7: #{actor_critic_act.1} parent=1 // pred_check_branch
      %18 = sbr.rel (0) target = $region9
    $region8: #{actor_critic_act.1} parent=1 // pred_region
      %s20 = ssub.s32 3072, 3072
      %21 = vsyncadd [#allocation4], %s20
      %s22 = sshll.u32 [#allocation3], 4
      %s23 = int_to_ptr.vmem [resolvable:$true] %s22
      %28 = dma.hbm_to_vmem [thread:$0]  %s1, 3072, %s23, [#allocation4], 128, 128, 8
    $region9: #{actor_critic_act.1} parent=1 // pred_fallthru
      _
    // Predicated region
    $region10: #{actor_critic_act.1} parent=1 // pred_check
      _
    $region11: #{actor_critic_act.1} parent=1 // pred_check_branch
      %30 = sbr.rel (0) target = $region13
    $region12: #{actor_critic_act.1} parent=1 // pred_region
      _
    $region13: #{actor_critic_act.1} parent=1 // pred_fallthru
      _
    // Predicated region
    $region14: #{actor_critic_act.1} parent=1 // pred_check
      _
    $region15: #{actor_critic_act.1} parent=1 // pred_check_branch
      %32 = sbr.rel (0) target = $region17
    $region16: #{actor_critic_act.1} parent=1 // pred_region
      %s34 = ssub.s32 16384, 16384
      %35 = vsyncadd [#allocation6], %s34
      %s36 = sshll.u32 [#allocation5], 4
      %s37 = int_to_ptr.vmem [resolvable:$true] %s36
      %42 = dma.hbm_to_vmem [thread:$0]  %s3, 16384, %s37, [#allocation6], 128, 128, 8
    $region17: #{actor_critic_act.1} parent=1 // pred_fallthru
      _
    // Predicated region
    $region18: #{actor_critic_act.1} parent=1 // pred_check
      _
    $region19: #{actor_critic_act.1} parent=1 // pred_check_branch
      %44 = sbr.rel (0) target = $region21
    $region20: #{actor_critic_act.1} parent=1 // pred_region
      %s46 = ssub.s32 6144, 6144
      %47 = vsyncadd [#allocation6], %s46
      %s48 = sshll.u32 [#allocation7], 4
      %s49 = int_to_ptr.vmem [resolvable:$true] %s48
      %54 = dma.hbm_to_vmem [thread:$0]  %s4, 6144, %s49, [#allocation6], 128, 128, 8
    $region21: #{actor_critic_act.1} parent=1 // pred_fallthru
      _
    // Predicated region
    $region22: #{actor_critic_act.1} parent=1 // pred_check
      _
    $region23: #{actor_critic_act.1} parent=1 // pred_check_branch
      %56 = sbr.rel (0) target = $region25
    $region24: #{actor_critic_act.1} parent=1 // pred_region
      _
    $region25: #{actor_critic_act.1} parent=1 // pred_fallthru
      _
    // Predicated region
    $region26: #{actor_critic_act.1} parent=1 // pred_check
      _
    $region27: #{actor_critic_act.1} parent=1 // pred_check_branch
      %58 = sbr.rel (0) target = $region29
    $region28: #{actor_critic_act.1} parent=1 // pred_region
      _
    $region29: #{actor_critic_act.1} parent=1 // pred_fallthru
      _
    // Predicated region
    $region30: #{actor_critic_act.1} parent=1 // pred_check
      _
    $region31: #{actor_critic_act.1} parent=1 // pred_check_branch
      %60 = sbr.rel (0) target = $region33
    $region32: #{actor_critic_act.1} parent=1 // pred_region
      _
    $region33: #{actor_critic_act.1} parent=1 // pred_fallthru
      _
    // Predicated region
    $region34: #{actor_critic_act.1} parent=1 // pred_check
      _
    $region35: #{actor_critic_act.1} parent=1 // pred_check_branch
      %62 = sbr.rel (0) target = $region37
    $region36: #{actor_critic_act.1} parent=1 // pred_region
      %63 = dma.done [#allocation4], 3072
    $region37: #{actor_critic_act.1} parent=1 // pred_fallthru
      _
    // Predicated region
    $region38: #{actor_critic_act.1} parent=1 // pred_check
      _
    $region39: #{actor_critic_act.1} parent=1 // pred_check_branch
      %65 = sbr.rel (0) target = $region41
    $region40: #{actor_critic_act.1} parent=1 // pred_region
      %66 = dma.done [#allocation6], 16384
    $region41: #{actor_critic_act.1} parent=1 // pred_fallthru
      _
    // Predicated region
    $region42: #{actor_critic_act.1} parent=1 // pred_check
      _
    $region43: #{actor_critic_act.1} parent=1 // pred_check_branch
      %68 = sbr.rel (0) target = $region45
    $region44: #{actor_critic_act.1} parent=1 // pred_region
      %69 = dma.done [#allocation6], 6144
    $region45: #{actor_critic_act.1} parent=1 // pred_fallthru
      _
    %v70 = vld [vmem:[%s6] sm:$0x1]
    %v71 = vld [vmem:[%s6 + $0x1] sm:$0x1]
    %v72 = vld [vmem:[%s6 + $0x2] sm:$0x1]
    %v73 = vld [vmem:[%s6 + $0x3] sm:$0x1]
    %v74 = vld [vmem:[%s6 + $0x4] sm:$0x1]
    %v75 = vld [vmem:[%s6 + $0x5] sm:$0x1]
    %v76 = vld [vmem:[%s6 + $0x6] sm:$0x1]
    %v77 = vld [vmem:[%s6 + $0x7] sm:$0x1]
    %v78 = vld [vmem:[%s0] sm:$0xff]
    %v79 = vld [vmem:[%s0 + $0x8] sm:$0xff]
    %v80 = vld [vmem:[%s0 + $0x10] sm:$0xff]
    %v81 = vld [vmem:[%s0 + $0x18] sm:$0xff]
    %v82 = vld [vmem:[#allocation3] sm:$0xff]
    %v83 = vld [vmem:[#allocation3 + $0x8] sm:$0xff]
    %v84 = vld [vmem:[#allocation3 + $0x10] sm:$0xff]
    %v85 = vld [vmem:[#allocation3 + $0x18] sm:$0xff]
    %v86 = vld [vmem:[#allocation3 + $0x20] sm:$0xff]
    %v87 = vld [vmem:[#allocation3 + $0x28] sm:$0xff]
    %v88 = vld [vmem:[#allocation3 + $0x30] sm:$0xff]
    %v89 = vld [vmem:[#allocation3 + $0x38] sm:$0xff]
    %vm90 = vcmask 523264
    %v92 = vsel %vm90, %v78, 0
    %v95 = vsel %vm90, %v79, 0
    %v98 = vsel %vm90, %v80, 0
    %v101 = vsel %vm90, %v81, 0
    %103 = vmatprep.subr.mxu0 0.0
    %104 = vmatpush1.msra.mxu0 %v82
    %105 = vmatprep.subr.mxu0 0.0
    %106 = vmatpush1.msra.mxu0 %v83
    %107 = vmatprep.subr.mxu0 0.0
    %108 = vmatpush1.msra.mxu0 %v84
    %109 = vmatprep.subr.mxu0 0.0
    %110 = vmatpush1.msra.mxu0 %v85
    %111 = vmatprep.subr.mxu0 0.0
    %112 = vmatpush1.msra.mxu0 %v86
    %113 = vmatprep.subr.mxu0 0.0
    %114 = vmatpush1.msra.mxu0 %v87
    %115 = vmatprep.subr.mxu0 0.0
    %116 = vmatpush1.msra.mxu0 %v88
    %117 = vmatprep.subr.mxu0 0.0
    %118 = vmatpush1.msra.mxu0 %v89
    %119 = vmatprep.subr.mxu0 0.0
    %120 = vmatpush1.msra.mxu0 0.0
    %121 = vmatprep.subr.mxu0 0.0
    %122 = vmatpush1.msra.mxu0 0.0
    %123 = vmatprep.subr.mxu0 0.0
    %124 = vmatpush1.msra.mxu0 0.0
    %125 = vmatprep.subr.mxu0 0.0
    %126 = vmatpush1.msra.mxu0 0.0
    %127 = vmatprep.subr.mxu0 0.0
    %128 = vmatpush1.msra.mxu0 0.0
    %129 = vmatprep.subr.mxu0 0.0
    %130 = vmatpush1.msra.mxu0 0.0
    %131 = vmatprep.subr.mxu0 0.0
    %132 = vmatpush1.msra.mxu0 0.0
    %133 = vmatprep.subr.mxu0 0.0
    %134 = vmatpush1.msra.mxu0 0.0
    %135 = vmatprep.subr.mxu0 0.0
    %136 = vmatpush1.msra.mxu0 0.0
    %137 = vmatprep.subr.mxu0 0.0
    %138 = vmatpush1.msra.mxu0 0.0
    %139 = vmatprep.subr.mxu0 0.0
    %140 = vmatpush1.msra.mxu0 0.0
    %141 = vmatprep.subr.mxu0 0.0
    %142 = vmatpush1.msra.mxu0 0.0
    %143 = vmatprep.subr.mxu0 0.0
    %144 = vmatpush1.msra.mxu0 0.0
    %145 = vmatprep.subr.mxu0 0.0
    %146 = vmatpush1.msra.mxu0 0.0
    %147 = vmatprep.subr.mxu0 0.0
    %148 = vmatpush1.msra.mxu0 0.0
    %149 = vmatprep.subr.mxu0 0.0
    %150 = vmatpush1.msra.mxu0 0.0
    %151 = vmatprep.subr.mxu0 0.0
    %152 = vmatpush1.msra.mxu0 0.0
    %153 = vmatprep.subr.mxu0 0.0
    %154 = vmatpush1.msra.mxu0 0.0
    %155 = vmatprep.subr.mxu0 0.0
    %156 = vmatpush1.msra.mxu0 0.0
    %157 = vmatprep.subr.mxu0 0.0
    %158 = vmatpush1.msra.mxu0 0.0
    %159 = vmatprep.subr.mxu0 0.0
    %160 = vmatpush1.msra.mxu0 0.0
    %161 = vmatprep.subr.mxu0 0.0
    %162 = vmatpush1.msra.mxu0 0.0
    %163 = vmatprep.subr.mxu0 0.0
    %164 = vmatpush1.msra.mxu0 0.0
    %165 = vmatprep.subr.mxu0 0.0
    %166 = vmatpush1.msra.mxu0 0.0
    %167 = vmatprep.mubr.f32.mxu0 0.0
    %168 = vmatmul.mubr.f32.gmra.mrb[0].mxu0 %v92
    %v169 = vpop.f32.mrb[0].mxu0
    %v170 = vadd.f32 0.0, %v169
    %v171 = vpop.f32.mrb[0].mxu0
    %172 = vmatprep.mubr.f32.mxu0 0.0
    %173 = vmatmul.mubr.f32.gmra.mrb[0].mxu0 %v95
    %v174 = vpop.f32.mrb[0].mxu0
    %v175 = vadd.f32 0.0, %v174
    %v176 = vpop.f32.mrb[0].mxu0
    %177 = vmatprep.mubr.f32.mxu0 0.0
    %178 = vmatmul.mubr.f32.gmra.mrb[0].mxu0 %v98
    %v179 = vpop.f32.mrb[0].mxu0
    %v180 = vadd.f32 0.0, %v179
    %v181 = vpop.f32.mrb[0].mxu0
    %182 = vmatprep.mubr.f32.mxu0 0.0
    %183 = vmatmul.mubr.f32.gmra.mrb[0].mxu0 %v101
    %v184 = vpop.f32.mrb[0].mxu0
    %v185 = vadd.f32 0.0, %v184
    %v186 = vpop.f32.mrb[0].mxu0
    %187 = vdwg.mxu0
    %s188 = scalar_lea.vmem [#allocation3], 64
    %v189 = vld [vmem:[%s188] sm:$0xff]
    %v190 = vld [vmem:[%s188 + $0x8] sm:$0xff]
    %v191 = vld [vmem:[%s188 + $0x10] sm:$0xff]
    %v192 = vld [vmem:[%s188 + $0x18] sm:$0xff]
    %v193 = vld [vmem:[%s188 + $0x20] sm:$0xff]
    %v194 = vld [vmem:[%s188 + $0x28] sm:$0xff]
    %v195 = vld [vmem:[%s188 + $0x30] sm:$0xff]
    %v196 = vld [vmem:[%s188 + $0x38] sm:$0xff]
    %s197 = scalar_lea.vmem [#allocation3], 128
    %v198 = vld [vmem:[%s197] sm:$0xff]
    %v199 = vld [vmem:[%s197 + $0x8] sm:$0xff]
    %v200 = vld [vmem:[%s197 + $0x10] sm:$0xff]
    %v201 = vld [vmem:[%s197 + $0x18] sm:$0xff]
    %v202 = vld [vmem:[%s197 + $0x20] sm:$0xff]
    %v203 = vld [vmem:[%s197 + $0x28] sm:$0xff]
    %v204 = vld [vmem:[%s197 + $0x30] sm:$0xff]
    %v205 = vld [vmem:[%s197 + $0x38] sm:$0xff]
    %206 = vmatprep.subr.mxu0 0.0
    %207 = vmatpush1.msra.mxu0 %v198
    %208 = vmatprep.subr.mxu0 0.0
    %209 = vmatpush1.msra.mxu0 %v199
    %210 = vmatprep.subr.mxu0 0.0
    %211 = vmatpush1.msra.mxu0 %v200
    %212 = vmatprep.subr.mxu0 0.0
    %213 = vmatpush1.msra.mxu0 %v201
    %214 = vmatprep.subr.mxu0 0.0
    %215 = vmatpush1.msra.mxu0 %v202
    %216 = vmatprep.subr.mxu0 0.0
    %217 = vmatpush1.msra.mxu0 %v203
    %218 = vmatprep.subr.mxu0 0.0
    %219 = vmatpush1.msra.mxu0 %v204
    %220 = vmatprep.subr.mxu0 0.0
    %221 = vmatpush1.msra.mxu0 %v205
    %222 = vmatprep.subr.mxu0 0.0
    %223 = vmatpush1.msra.mxu0 0.0
    %224 = vmatprep.subr.mxu0 0.0
    %225 = vmatpush1.msra.mxu0 0.0
    %226 = vmatprep.subr.mxu0 0.0
    %227 = vmatpush1.msra.mxu0 0.0
    %228 = vmatprep.subr.mxu0 0.0
    %229 = vmatpush1.msra.mxu0 0.0
    %230 = vmatprep.subr.mxu0 0.0
    %231 = vmatpush1.msra.mxu0 0.0
    %232 = vmatprep.subr.mxu0 0.0
    %233 = vmatpush1.msra.mxu0 0.0
    %234 = vmatprep.subr.mxu0 0.0
    %235 = vmatpush1.msra.mxu0 0.0
    %236 = vmatprep.subr.mxu0 0.0
    %237 = vmatpush1.msra.mxu0 0.0
    %238 = vmatprep.subr.mxu0 0.0
    %239 = vmatpush1.msra.mxu0 0.0
    %240 = vmatprep.subr.mxu0 0.0
    %241 = vmatpush1.msra.mxu0 0.0
    %242 = vmatprep.subr.mxu0 0.0
    %243 = vmatpush1.msra.mxu0 0.0
    %244 = vmatprep.subr.mxu0 0.0
    %245 = vmatpush1.msra.mxu0 0.0
    %246 = vmatprep.subr.mxu0 0.0
    %247 = vmatpush1.msra.mxu0 0.0
    %248 = vmatprep.subr.mxu0 0.0
    %249 = vmatpush1.msra.mxu0 0.0
    %250 = vmatprep.subr.mxu0 0.0
    %251 = vmatpush1.msra.mxu0 0.0
    %252 = vmatprep.subr.mxu0 0.0
    %253 = vmatpush1.msra.mxu0 0.0
    %254 = vmatprep.subr.mxu0 0.0
    %255 = vmatpush1.msra.mxu0 0.0
    %256 = vmatprep.subr.mxu0 0.0
    %257 = vmatpush1.msra.mxu0 0.0
    %258 = vmatprep.subr.mxu0 0.0
    %259 = vmatpush1.msra.mxu0 0.0
    %260 = vmatprep.subr.mxu0 0.0
    %261 = vmatpush1.msra.mxu0 0.0
    %262 = vmatprep.subr.mxu0 0.0
    %263 = vmatpush1.msra.mxu0 0.0
    %264 = vmatprep.subr.mxu0 0.0
    %265 = vmatpush1.msra.mxu0 0.0
    %266 = vmatprep.subr.mxu0 0.0
    %267 = vmatpush1.msra.mxu0 0.0
    %268 = vmatprep.subr.mxu0 0.0
    %269 = vmatpush1.msra.mxu0 0.0
    %270 = vmatprep.mubr.f32.mxu0 0.0
    %271 = vmatmul.mubr.f32.gmra.mrb[0].mxu0 %v92
    %v272 = vpop.f32.mrb[0].mxu0
    %v273 = vadd.f32 0.0, %v272
    %v274 = vpop.f32.mrb[0].mxu0
    %275 = vmatprep.mubr.f32.mxu0 0.0
    %276 = vmatmul.mubr.f32.gmra.mrb[0].mxu0 %v95
    %v277 = vpop.f32.mrb[0].mxu0
    %v278 = vadd.f32 0.0, %v277
    %v279 = vpop.f32.mrb[0].mxu0
    %280 = vmatprep.mubr.f32.mxu0 0.0
    %281 = vmatmul.mubr.f32.gmra.mrb[0].mxu0 %v98
    %v282 = vpop.f32.mrb[0].mxu0
    %v283 = vadd.f32 0.0, %v282
    %v284 = vpop.f32.mrb[0].mxu0
    %285 = vmatprep.mubr.f32.mxu0 0.0
    %286 = vmatmul.mubr.f32.gmra.mrb[0].mxu0 %v101
    %v287 = vpop.f32.mrb[0].mxu0
    %v288 = vadd.f32 0.0, %v287
    %v289 = vpop.f32.mrb[0].mxu0
    %290 = vdwg.mxu0
    %v291 = vlaneseq
    %v292 = vshrl.u32 %v291, 7
    %v293 = vadd.s32 %v292, 8
    %v294 = vadd.s32 %v292, 16
    %v295 = vadd.s32 %v292, 24
    %v296 = vand.u32 %v292, 15
    %v297 = vand.u32 %v293, 15
    %v298 = vand.u32 %v294, 15
    %v299 = vand.u32 %v295, 15
    %vm300 = vcmp.ne.s32.totalorder %v296, 0
    %vm301 = vcmp.ne.s32.totalorder %v297, 0
    %vm302 = vcmp.ne.s32.totalorder %v298, 0
    %vm303 = vcmp.ne.s32.totalorder %v299, 0
    %v304 = vsel %vm300, 1, 0
    %v305 = vsel %vm301, 1, 0
    %v306 = vsel %vm302, 1, 0
    %v307 = vsel %vm303, 1, 0
    %v308 = vcvt.s32.f32 %v304
    %v309 = vcvt.s32.f32 %v305
    %v310 = vcvt.s32.f32 %v306
    %v311 = vcvt.s32.f32 %v307
    %vm312 = vcmp.ne.s32.totalorder %v296, 15
    %vm313 = vcmp.ne.s32.totalorder %v297, 15
    %vm314 = vcmp.ne.s32.totalorder %v298, 15
    %vm315 = vcmp.ne.s32.totalorder %v299, 15
    %v316 = vsel %vm312, 1, 0
    %v317 = vsel %vm313, 1, 0
    %v318 = vsel %vm314, 1, 0
    %v319 = vsel %vm315, 1, 0
    %v320 = vcvt.s32.f32 %v316
    %v321 = vcvt.s32.f32 %v317
    %v322 = vcvt.s32.f32 %v318
    %v323 = vcvt.s32.f32 %v319
    %v324 = vrot.slane %v170, 7
    %v325 = vrot.slane %v175, 7
    %v326 = vrot.slane %v180, 7
    %v327 = vrot.slane %v185, 7
    %vm328 = vcmp.lt.s32.totalorder %v292, 1
    %v329 = vsel %vm328, %v326, %v327
    %v330 = vsel %vm328, %v325, %v326
    %v331 = vsel %vm328, %v324, %v325
    %v332 = vsel %vm328, %v327, %v324
    %v333 = vmul.f32 %v332, %v308
    %v334 = vmul.f32 %v331, %v309
    %v335 = vmul.f32 %v330, %v310
    %v336 = vmul.f32 %v329, %v311
    %v337 = vrot.slane %v273, 1
    %v338 = vrot.slane %v278, 1
    %v339 = vrot.slane %v283, 1
    %v340 = vrot.slane %v288, 1
    %vm341 = vcmp.lt.s32.totalorder %v292, 7
    %v342 = vsel %vm341, %v339, %v340
    %v343 = vsel %vm341, %v338, %v339
    %v344 = vsel %vm341, %v337, %v338
    %v345 = vsel %vm341, %v340, %v337
    %v346 = vmul.f32 %v344, %v320
    %v347 = vmul.f32 %v343, %v321
    %v348 = vmul.f32 %v342, %v322
    %v349 = vmul.f32 %v345, %v323
    %350 = vmatprep.subr.mxu0 0.0
    %351 = vmatpush1.msra.mxu0 %v189
    %352 = vmatprep.subr.mxu0 0.0
    %353 = vmatpush1.msra.mxu0 %v190
    %354 = vmatprep.subr.mxu0 0.0
    %355 = vmatpush1.msra.mxu0 %v191
    %356 = vmatprep.subr.mxu0 0.0
    %357 = vmatpush1.msra.mxu0 %v192
    %358 = vmatprep.subr.mxu0 0.0
    %359 = vmatpush1.msra.mxu0 %v193
    %360 = vmatprep.subr.mxu0 0.0
    %361 = vmatpush1.msra.mxu0 %v194
    %362 = vmatprep.subr.mxu0 0.0
    %363 = vmatpush1.msra.mxu0 %v195
    %364 = vmatprep.subr.mxu0 0.0
    %365 = vmatpush1.msra.mxu0 %v196
    %366 = vmatprep.subr.mxu0 0.0
    %367 = vmatpush1.msra.mxu0 0.0
    %368 = vmatprep.subr.mxu0 0.0
    %369 = vmatpush1.msra.mxu0 0.0
    %370 = vmatprep.subr.mxu0 0.0
    %371 = vmatpush1.msra.mxu0 0.0
    %372 = vmatprep.subr.mxu0 0.0
    %373 = vmatpush1.msra.mxu0 0.0
    %374 = vmatprep.subr.mxu0 0.0
    %375 = vmatpush1.msra.mxu0 0.0
    %376 = vmatprep.subr.mxu0 0.0
    %377 = vmatpush1.msra.mxu0 0.0
    %378 = vmatprep.subr.mxu0 0.0
    %379 = vmatpush1.msra.mxu0 0.0
    %380 = vmatprep.subr.mxu0 0.0
    %381 = vmatpush1.msra.mxu0 0.0
    %382 = vmatprep.subr.mxu0 0.0
    %383 = vmatpush1.msra.mxu0 0.0
    %384 = vmatprep.subr.mxu0 0.0
    %385 = vmatpush1.msra.mxu0 0.0
    %386 = vmatprep.subr.mxu0 0.0
    %387 = vmatpush1.msra.mxu0 0.0
    %388 = vmatprep.subr.mxu0 0.0
    %389 = vmatpush1.msra.mxu0 0.0
    %390 = vmatprep.subr.mxu0 0.0
    %391 = vmatpush1.msra.mxu0 0.0
    %392 = vmatprep.subr.mxu0 0.0
    %393 = vmatpush1.msra.mxu0 0.0
    %394 = vmatprep.subr.mxu0 0.0
    %395 = vmatpush1.msra.mxu0 0.0
    %396 = vmatprep.subr.mxu0 0.0
    %397 = vmatpush1.msra.mxu0 0.0
    %398 = vmatprep.subr.mxu0 0.0
    %399 = vmatpush1.msra.mxu0 0.0
    %400 = vmatprep.subr.mxu0 0.0
    %401 = vmatpush1.msra.mxu0 0.0
    %402 = vmatprep.subr.mxu0 0.0
    %403 = vmatpush1.msra.mxu0 0.0
    %404 = vmatprep.subr.mxu0 0.0
    %405 = vmatpush1.msra.mxu0 0.0
    %406 = vmatprep.subr.mxu0 0.0
    %407 = vmatpush1.msra.mxu0 0.0
    %408 = vmatprep.subr.mxu0 0.0
    %409 = vmatpush1.msra.mxu0 0.0
    %410 = vmatprep.subr.mxu0 0.0
    %411 = vmatpush1.msra.mxu0 0.0
    %412 = vmatprep.subr.mxu0 0.0
    %413 = vmatpush1.msra.mxu0 0.0
    %414 = vmatprep.mubr.f32.mxu0 0.0
    %415 = vmatmul.mubr.f32.gmra.mrb[0].mxu0 %v92
    %v416 = vpop.f32.mrb[0].mxu0
    %v417 = vadd.f32 %v333, %v416
    %v418 = vpop.f32.mrb[0].mxu0
    %419 = vmatprep.mubr.f32.mxu0 0.0
    %420 = vmatmul.mubr.f32.gmra.mrb[0].mxu0 %v95
    %v421 = vpop.f32.mrb[0].mxu0
    %v422 = vadd.f32 %v334, %v421
    %v423 = vpop.f32.mrb[0].mxu0
    %424 = vmatprep.mubr.f32.mxu0 0.0
    %425 = vmatmul.mubr.f32.gmra.mrb[0].mxu0 %v98
    %v426 = vpop.f32.mrb[0].mxu0
    %v427 = vadd.f32 %v335, %v426
    %v428 = vpop.f32.mrb[0].mxu0
    %429 = vmatprep.mubr.f32.mxu0 0.0
    %430 = vmatmul.mubr.f32.gmra.mrb[0].mxu0 %v101
    %v431 = vpop.f32.mrb[0].mxu0
    %v432 = vadd.f32 %v336, %v431
    %v433 = vpop.f32.mrb[0].mxu0
    %434 = vdwg.mxu0
    %v435 = vadd.f32 %v417, %v346
    %v436 = vadd.f32 %v422, %v347
    %v437 = vadd.f32 %v427, %v348
    %v438 = vadd.f32 %v432, %v349
    %v439 = vlaneseq
    %v440 = vshrl.u32 %v439, 7
    %v441 = vsub.s32 0, %v440
    %v442 = vrot.slane %v70, %v441
    %v443 = vadd.f32 %v435, %v442
    %v444 = vadd.f32 %v436, %v442
    %v445 = vadd.f32 %v437, %v442
    %v446 = vadd.f32 %v438, %v442
    %v447 = vmax.f32 %v443, 0.0
    %v448 = vmax.f32 %v444, 0.0
    %v449 = vmax.f32 %v445, 0.0
    %v450 = vmax.f32 %v446, 0.0
    %v451 = vld [vmem:[%s5] sm:$0xff]
    %v452 = vld [vmem:[%s5 + $0x8] sm:$0xff]
    %vm453 = vcmask 261120
    %v455 = vsel %vm453, %v451, 0
    %v458 = vsel %vm453, %v452, 0
    %460 = vmatprep.subr.mxu0 0.0
    %461 = vmatpush1.msra.mxu0 %v447
    %462 = vmatprep.subr.mxu0 0.0
    %463 = vmatpush1.msra.mxu0 %v448
    %464 = vmatprep.subr.mxu0 0.0
    %465 = vmatpush1.msra.mxu0 %v449
    %466 = vmatprep.subr.mxu0 0.0
    %467 = vmatpush1.msra.mxu0 %v450
    %468 = vmatprep.subr.mxu0 0.0
    %469 = vmatpush1.msra.mxu0 0.0
    %470 = vmatprep.subr.mxu0 0.0
    %471 = vmatpush1.msra.mxu0 0.0
    %472 = vmatprep.subr.mxu0 0.0
    %473 = vmatpush1.msra.mxu0 0.0
    %474 = vmatprep.subr.mxu0 0.0
    %475 = vmatpush1.msra.mxu0 0.0
    %476 = vmatprep.subr.mxu0 0.0
    %477 = vmatpush1.msra.mxu0 0.0
    %478 = vmatprep.subr.mxu0 0.0
    %479 = vmatpush1.msra.mxu0 0.0
    %480 = vmatprep.subr.mxu0 0.0
    %481 = vmatpush1.msra.mxu0 0.0
    %482 = vmatprep.subr.mxu0 0.0
    %483 = vmatpush1.msra.mxu0 0.0
    %484 = vmatprep.subr.mxu0 0.0
    %485 = vmatpush1.msra.mxu0 0.0
    %486 = vmatprep.subr.mxu0 0.0
    %487 = vmatpush1.msra.mxu0 0.0
    %488 = vmatprep.subr.mxu0 0.0
    %489 = vmatpush1.msra.mxu0 0.0
    %490 = vmatprep.subr.mxu0 0.0
    %491 = vmatpush1.msra.mxu0 0.0
    %492 = vmatprep.subr.mxu0 0.0
    %493 = vmatpush1.msra.mxu0 0.0
    %494 = vmatprep.subr.mxu0 0.0
    %495 = vmatpush1.msra.mxu0 0.0
    %496 = vmatprep.subr.mxu0 0.0
    %497 = vmatpush1.msra.mxu0 0.0
    %498 = vmatprep.subr.mxu0 0.0
    %499 = vmatpush1.msra.mxu0 0.0
    %500 = vmatprep.subr.mxu0 0.0
    %501 = vmatpush1.msra.mxu0 0.0
    %502 = vmatprep.subr.mxu0 0.0
    %503 = vmatpush1.msra.mxu0 0.0
    %504 = vmatprep.subr.mxu0 0.0
    %505 = vmatpush1.msra.mxu0 0.0
    %506 = vmatprep.subr.mxu0 0.0
    %507 = vmatpush1.msra.mxu0 0.0
    %508 = vmatprep.subr.mxu0 0.0
    %509 = vmatpush1.msra.mxu0 0.0
    %510 = vmatprep.subr.mxu0 0.0
    %511 = vmatpush1.msra.mxu0 0.0
    %512 = vmatprep.subr.mxu0 0.0
    %513 = vmatpush1.msra.mxu0 0.0
    %514 = vmatprep.subr.mxu0 0.0
    %515 = vmatpush1.msra.mxu0 0.0
    %516 = vmatprep.subr.mxu0 0.0
    %517 = vmatpush1.msra.mxu0 0.0
    %518 = vmatprep.subr.mxu0 0.0
    %519 = vmatpush1.msra.mxu0 0.0
    %520 = vmatprep.subr.mxu0 0.0
    %521 = vmatpush1.msra.mxu0 0.0
    %522 = vmatprep.subr.mxu0 0.0
    %523 = vmatpush1.msra.mxu0 0.0
    %524 = vmatprep.mubr.f32.mxu0 0.0
    %525 = vmatmul.mubr.f32.gmra.mrb[0].mxu0 %v455
    %v526 = vpop.f32.mrb[0].mxu0
    %v527 = vadd.f32 0.0, %v526
    %v528 = vpop.f32.mrb[0].mxu0
    %529 = vmatprep.mubr.f32.mxu0 0.0
    %530 = vmatmul.mubr.f32.gmra.mrb[0].mxu0 %v458
    %v531 = vpop.f32.mrb[0].mxu0
    %v532 = vadd.f32 0.0, %v531
    %v533 = vpop.f32.mrb[0].mxu0
    %534 = vdwg.mxu0
    %v535 = vld [vmem:[%s2] sm:$0xff]
    %v536 = vld [vmem:[%s2 + $0x8] sm:$0xff]
    %v537 = vld [vmem:[%s2 + $0x10] sm:$0xff]
    %v538 = vld [vmem:[%s2 + $0x18] sm:$0xff]
    %v539 = vld [vmem:[%s2 + $0x20] sm:$0xff]
    %v540 = vld [vmem:[%s2 + $0x28] sm:$0xff]
    %v541 = vld [vmem:[%s2 + $0x30] sm:$0xff]
    %v542 = vld [vmem:[%s2 + $0x38] sm:$0xff]
    %v543 = vld [vmem:[%s2 + $0x40] sm:$0xff]
    %v544 = vld [vmem:[%s2 + $0x48] sm:$0xff]
    %v545 = vld [vmem:[%s2 + $0x50] sm:$0xff]
    %v546 = vld [vmem:[%s2 + $0x58] sm:$0xff]
    %v547 = vld [vmem:[%s2 + $0x60] sm:$0xff]
    %v548 = vld [vmem:[%s2 + $0x68] sm:$0xff]
    %v549 = vld [vmem:[%s2 + $0x70] sm:$0xff]
    %v550 = vld [vmem:[%s2 + $0x78] sm:$0xff]
    %s551 = scalar_lea.vmem %s5, 16
    %v552 = vld [vmem:[%s551] sm:$0xff]
    %v553 = vld [vmem:[%s551 + $0x8] sm:$0xff]
    %v555 = vsel %vm453, %v552, 0
    %v558 = vsel %vm453, %v553, 0
    %560 = vmatprep.subr.mxu0 0.0
    %561 = vmatpush1.msra.mxu0 %v447
    %562 = vmatprep.subr.mxu0 0.0
    %563 = vmatpush1.msra.mxu0 %v448
    %564 = vmatprep.subr.mxu0 0.0
    %565 = vmatpush1.msra.mxu0 %v449
    %566 = vmatprep.subr.mxu0 0.0
    %567 = vmatpush1.msra.mxu0 %v450
    %568 = vmatprep.subr.mxu0 0.0
    %569 = vmatpush1.msra.mxu0 0.0
    %570 = vmatprep.subr.mxu0 0.0
    %571 = vmatpush1.msra.mxu0 0.0
    %572 = vmatprep.subr.mxu0 0.0
    %573 = vmatpush1.msra.mxu0 0.0
    %574 = vmatprep.subr.mxu0 0.0
    %575 = vmatpush1.msra.mxu0 0.0
    %576 = vmatprep.subr.mxu0 0.0
    %577 = vmatpush1.msra.mxu0 0.0
    %578 = vmatprep.subr.mxu0 0.0
    %579 = vmatpush1.msra.mxu0 0.0
    %580 = vmatprep.subr.mxu0 0.0
    %581 = vmatpush1.msra.mxu0 0.0
    %582 = vmatprep.subr.mxu0 0.0
    %583 = vmatpush1.msra.mxu0 0.0
    %584 = vmatprep.subr.mxu0 0.0
    %585 = vmatpush1.msra.mxu0 0.0
    %586 = vmatprep.subr.mxu0 0.0
    %587 = vmatpush1.msra.mxu0 0.0
    %588 = vmatprep.subr.mxu0 0.0
    %589 = vmatpush1.msra.mxu0 0.0
    %590 = vmatprep.subr.mxu0 0.0
    %591 = vmatpush1.msra.mxu0 0.0
    %592 = vmatprep.subr.mxu0 0.0
    %593 = vmatpush1.msra.mxu0 0.0
    %594 = vmatprep.subr.mxu0 0.0
    %595 = vmatpush1.msra.mxu0 0.0
    %596 = vmatprep.subr.mxu0 0.0
    %597 = vmatpush1.msra.mxu0 0.0
    %598 = vmatprep.subr.mxu0 0.0
    %599 = vmatpush1.msra.mxu0 0.0
    %600 = vmatprep.subr.mxu0 0.0
    %601 = vmatpush1.msra.mxu0 0.0
    %602 = vmatprep.subr.mxu0 0.0
    %603 = vmatpush1.msra.mxu0 0.0
    %604 = vmatprep.subr.mxu0 0.0
    %605 = vmatpush1.msra.mxu0 0.0
    %606 = vmatprep.subr.mxu0 0.0
    %607 = vmatpush1.msra.mxu0 0.0
    %608 = vmatprep.subr.mxu0 0.0
    %609 = vmatpush1.msra.mxu0 0.0
    %610 = vmatprep.subr.mxu0 0.0
    %611 = vmatpush1.msra.mxu0 0.0
    %612 = vmatprep.subr.mxu0 0.0
    %613 = vmatpush1.msra.mxu0 0.0
    %614 = vmatprep.subr.mxu0 0.0
    %615 = vmatpush1.msra.mxu0 0.0
    %616 = vmatprep.subr.mxu0 0.0
    %617 = vmatpush1.msra.mxu0 0.0
    %618 = vmatprep.subr.mxu0 0.0
    %619 = vmatpush1.msra.mxu0 0.0
    %620 = vmatprep.subr.mxu0 0.0
    %621 = vmatpush1.msra.mxu0 0.0
    %622 = vmatprep.subr.mxu0 0.0
    %623 = vmatpush1.msra.mxu0 0.0
    %624 = vmatprep.mubr.f32.mxu0 0.0
    %625 = vmatmul.mubr.f32.gmra.mrb[0].mxu0 %v555
    %v626 = vpop.f32.mrb[0].mxu0
    %v627 = vadd.f32 0.0, %v626
    %v628 = vpop.f32.mrb[0].mxu0
    %629 = vmatprep.mubr.f32.mxu0 0.0
    %630 = vmatmul.mubr.f32.gmra.mrb[0].mxu0 %v558
    %v631 = vpop.f32.mrb[0].mxu0
    %v632 = vadd.f32 0.0, %v631
    %v633 = vpop.f32.mrb[0].mxu0
    %634 = vdwg.mxu0
    %s635 = scalar_lea.vmem %s2, 128
    %v636 = vld [vmem:[%s635] sm:$0xff]
    %v637 = vld [vmem:[%s635 + $0x8] sm:$0xff]
    %v638 = vld [vmem:[%s635 + $0x10] sm:$0xff]
    %v639 = vld [vmem:[%s635 + $0x18] sm:$0xff]
    %v640 = vld [vmem:[%s635 + $0x20] sm:$0xff]
    %v641 = vld [vmem:[%s635 + $0x28] sm:$0xff]
    %v642 = vld [vmem:[%s635 + $0x30] sm:$0xff]
    %v643 = vld [vmem:[%s635 + $0x38] sm:$0xff]
    %v644 = vld [vmem:[%s635 + $0x40] sm:$0xff]
    %v645 = vld [vmem:[%s635 + $0x48] sm:$0xff]
    %v646 = vld [vmem:[%s635 + $0x50] sm:$0xff]
    %v647 = vld [vmem:[%s635 + $0x58] sm:$0xff]
    %v648 = vld [vmem:[%s635 + $0x60] sm:$0xff]
    %v649 = vld [vmem:[%s635 + $0x68] sm:$0xff]
    %v650 = vld [vmem:[%s635 + $0x70] sm:$0xff]
    %v651 = vld [vmem:[%s635 + $0x78] sm:$0xff]
    %652 = vmatprep.subr.mxu0 0.0
    %653 = vmatpush1.msra.mxu0 %v636
    %654 = vmatprep.subr.mxu0 0.0
    %655 = vmatpush1.msra.mxu0 %v637
    %656 = vmatprep.subr.mxu0 0.0
    %657 = vmatpush1.msra.mxu0 %v638
    %658 = vmatprep.subr.mxu0 0.0
    %659 = vmatpush1.msra.mxu0 %v639
    %660 = vmatprep.subr.mxu0 0.0
    %661 = vmatpush1.msra.mxu0 %v640
    %662 = vmatprep.subr.mxu0 0.0
    %663 = vmatpush1.msra.mxu0 %v641
    %664 = vmatprep.subr.mxu0 0.0
    %665 = vmatpush1.msra.mxu0 %v642
    %666 = vmatprep.subr.mxu0 0.0
    %667 = vmatpush1.msra.mxu0 %v643
    %668 = vmatprep.subr.mxu0 0.0
    %669 = vmatpush1.msra.mxu0 %v644
    %670 = vmatprep.subr.mxu0 0.0
    %671 = vmatpush1.msra.mxu0 %v645
    %672 = vmatprep.subr.mxu0 0.0
    %673 = vmatpush1.msra.mxu0 %v646
    %674 = vmatprep.subr.mxu0 0.0
    %675 = vmatpush1.msra.mxu0 %v647
    %676 = vmatprep.subr.mxu0 0.0
    %677 = vmatpush1.msra.mxu0 %v648
    %678 = vmatprep.subr.mxu0 0.0
    %679 = vmatpush1.msra.mxu0 %v649
    %680 = vmatprep.subr.mxu0 0.0
    %681 = vmatpush1.msra.mxu0 %v650
    %682 = vmatprep.subr.mxu0 0.0
    %683 = vmatpush1.msra.mxu0 %v651
    %684 = vmatprep.subr.mxu0 0.0
    %685 = vmatpush1.msra.mxu0 0.0
    %686 = vmatprep.subr.mxu0 0.0
    %687 = vmatpush1.msra.mxu0 0.0
    %688 = vmatprep.subr.mxu0 0.0
    %689 = vmatpush1.msra.mxu0 0.0
    %690 = vmatprep.subr.mxu0 0.0
    %691 = vmatpush1.msra.mxu0 0.0
    %692 = vmatprep.subr.mxu0 0.0
    %693 = vmatpush1.msra.mxu0 0.0
    %694 = vmatprep.subr.mxu0 0.0
    %695 = vmatpush1.msra.mxu0 0.0
    %696 = vmatprep.subr.mxu0 0.0
    %697 = vmatpush1.msra.mxu0 0.0
    %698 = vmatprep.subr.mxu0 0.0
    %699 = vmatpush1.msra.mxu0 0.0
    %700 = vmatprep.subr.mxu0 0.0
    %701 = vmatpush1.msra.mxu0 0.0
    %702 = vmatprep.subr.mxu0 0.0
    %703 = vmatpush1.msra.mxu0 0.0
    %704 = vmatprep.subr.mxu0 0.0
    %705 = vmatpush1.msra.mxu0 0.0
    %706 = vmatprep.subr.mxu0 0.0
    %707 = vmatpush1.msra.mxu0 0.0
    %708 = vmatprep.subr.mxu0 0.0
    %709 = vmatpush1.msra.mxu0 0.0
    %710 = vmatprep.subr.mxu0 0.0
    %711 = vmatpush1.msra.mxu0 0.0
    %712 = vmatprep.subr.mxu0 0.0
    %713 = vmatpush1.msra.mxu0 0.0
    %714 = vmatprep.subr.mxu0 0.0
    %715 = vmatpush1.msra.mxu0 0.0
    %716 = vmatprep.mubr.f32.mxu0 0.0
    %717 = vmatmul.mubr.f32.gmra.mrb[0].mxu0 %v627
    %v718 = vpop.f32.mrb[0].mxu0
    %v719 = vadd.f32 0.0, %v718
    %v720 = vpop.f32.mrb[0].mxu0
    %721 = vmatprep.mubr.f32.mxu0 0.0
    %722 = vmatmul.mubr.f32.gmra.mrb[0].mxu0 %v632
    %v723 = vpop.f32.mrb[0].mxu0
    %v724 = vadd.f32 0.0, %v723
    %v725 = vpop.f32.mrb[0].mxu0
    %726 = vdwg.mxu0
    %727 = vmatprep.subr.mxu0 0.0
    %728 = vmatpush1.msra.mxu0 %v535
    %729 = vmatprep.subr.mxu0 0.0
    %730 = vmatpush1.msra.mxu0 %v536
    %731 = vmatprep.subr.mxu0 0.0
    %732 = vmatpush1.msra.mxu0 %v537
    %733 = vmatprep.subr.mxu0 0.0
    %734 = vmatpush1.msra.mxu0 %v538
    %735 = vmatprep.subr.mxu0 0.0
    %736 = vmatpush1.msra.mxu0 %v539
    %737 = vmatprep.subr.mxu0 0.0
    %738 = vmatpush1.msra.mxu0 %v540
    %739 = vmatprep.subr.mxu0 0.0
    %740 = vmatpush1.msra.mxu0 %v541
    %741 = vmatprep.subr.mxu0 0.0
    %742 = vmatpush1.msra.mxu0 %v542
    %743 = vmatprep.subr.mxu0 0.0
    %744 = vmatpush1.msra.mxu0 %v543
    %745 = vmatprep.subr.mxu0 0.0
    %746 = vmatpush1.msra.mxu0 %v544
    %747 = vmatprep.subr.mxu0 0.0
    %748 = vmatpush1.msra.mxu0 %v545
    %749 = vmatprep.subr.mxu0 0.0
    %750 = vmatpush1.msra.mxu0 %v546
    %751 = vmatprep.subr.mxu0 0.0
    %752 = vmatpush1.msra.mxu0 %v547
    %753 = vmatprep.subr.mxu0 0.0
    %754 = vmatpush1.msra.mxu0 %v548
    %755 = vmatprep.subr.mxu0 0.0
    %756 = vmatpush1.msra.mxu0 %v549
    %757 = vmatprep.subr.mxu0 0.0
    %758 = vmatpush1.msra.mxu0 %v550
    %759 = vmatprep.subr.mxu0 0.0
    %760 = vmatpush1.msra.mxu0 0.0
    %761 = vmatprep.subr.mxu0 0.0
    %762 = vmatpush1.msra.mxu0 0.0
    %763 = vmatprep.subr.mxu0 0.0
    %764 = vmatpush1.msra.mxu0 0.0
    %765 = vmatprep.subr.mxu0 0.0
    %766 = vmatpush1.msra.mxu0 0.0
    %767 = vmatprep.subr.mxu0 0.0
    %768 = vmatpush1.msra.mxu0 0.0
    %769 = vmatprep.subr.mxu0 0.0
    %770 = vmatpush1.msra.mxu0 0.0
    %771 = vmatprep.subr.mxu0 0.0
    %772 = vmatpush1.msra.mxu0 0.0
    %773 = vmatprep.subr.mxu0 0.0
    %774 = vmatpush1.msra.mxu0 0.0
    %775 = vmatprep.subr.mxu0 0.0
    %776 = vmatpush1.msra.mxu0 0.0
    %777 = vmatprep.subr.mxu0 0.0
    %778 = vmatpush1.msra.mxu0 0.0
    %779 = vmatprep.subr.mxu0 0.0
    %780 = vmatpush1.msra.mxu0 0.0
    %781 = vmatprep.subr.mxu0 0.0
    %782 = vmatpush1.msra.mxu0 0.0
    %783 = vmatprep.subr.mxu0 0.0
    %784 = vmatpush1.msra.mxu0 0.0
    %785 = vmatprep.subr.mxu0 0.0
    %786 = vmatpush1.msra.mxu0 0.0
    %787 = vmatprep.subr.mxu0 0.0
    %788 = vmatpush1.msra.mxu0 0.0
    %789 = vmatprep.subr.mxu0 0.0
    %790 = vmatpush1.msra.mxu0 0.0
    %791 = vmatprep.mubr.f32.mxu0 0.0
    %792 = vmatmul.mubr.f32.gmra.mrb[0].mxu0 %v527
    %v793 = vpop.f32.mrb[0].mxu0
    %v794 = vadd.f32 %v719, %v793
    %v795 = vpop.f32.mrb[0].mxu0
    %796 = vmatprep.mubr.f32.mxu0 0.0
    %797 = vmatmul.mubr.f32.gmra.mrb[0].mxu0 %v532
    %v798 = vpop.f32.mrb[0].mxu0
    %v799 = vadd.f32 %v724, %v798
    %v800 = vpop.f32.mrb[0].mxu0
    %801 = vdwg.mxu0
    %s802 = scalar_lea.vmem %s5, 32
    %v803 = vld [vmem:[%s802] sm:$0xff]
    %v804 = vld [vmem:[%s802 + $0x8] sm:$0xff]
    %v806 = vsel %vm453, %v803, 0
    %v809 = vsel %vm453, %v804, 0
    %811 = vmatprep.subr.mxu0 0.0
    %812 = vmatpush1.msra.mxu0 %v447
    %813 = vmatprep.subr.mxu0 0.0
    %814 = vmatpush1.msra.mxu0 %v448
    %815 = vmatprep.subr.mxu0 0.0
    %816 = vmatpush1.msra.mxu0 %v449
    %817 = vmatprep.subr.mxu0 0.0
    %818 = vmatpush1.msra.mxu0 %v450
    %819 = vmatprep.subr.mxu0 0.0
    %820 = vmatpush1.msra.mxu0 0.0
    %821 = vmatprep.subr.mxu0 0.0
    %822 = vmatpush1.msra.mxu0 0.0
    %823 = vmatprep.subr.mxu0 0.0
    %824 = vmatpush1.msra.mxu0 0.0
    %825 = vmatprep.subr.mxu0 0.0
    %826 = vmatpush1.msra.mxu0 0.0
    %827 = vmatprep.subr.mxu0 0.0
    %828 = vmatpush1.msra.mxu0 0.0
    %829 = vmatprep.subr.mxu0 0.0
    %830 = vmatpush1.msra.mxu0 0.0
    %831 = vmatprep.subr.mxu0 0.0
    %832 = vmatpush1.msra.mxu0 0.0
    %833 = vmatprep.subr.mxu0 0.0
    %834 = vmatpush1.msra.mxu0 0.0
    %835 = vmatprep.subr.mxu0 0.0
    %836 = vmatpush1.msra.mxu0 0.0
    %837 = vmatprep.subr.mxu0 0.0
    %838 = vmatpush1.msra.mxu0 0.0
    %839 = vmatprep.subr.mxu0 0.0
    %840 = vmatpush1.msra.mxu0 0.0
    %841 = vmatprep.subr.mxu0 0.0
    %842 = vmatpush1.msra.mxu0 0.0
    %843 = vmatprep.subr.mxu0 0.0
    %844 = vmatpush1.msra.mxu0 0.0
    %845 = vmatprep.subr.mxu0 0.0
    %846 = vmatpush1.msra.mxu0 0.0
    %847 = vmatprep.subr.mxu0 0.0
    %848 = vmatpush1.msra.mxu0 0.0
    %849 = vmatprep.subr.mxu0 0.0
    %850 = vmatpush1.msra.mxu0 0.0
    %851 = vmatprep.subr.mxu0 0.0
    %852 = vmatpush1.msra.mxu0 0.0
    %853 = vmatprep.subr.mxu0 0.0
    %854 = vmatpush1.msra.mxu0 0.0
    %855 = vmatprep.subr.mxu0 0.0
    %856 = vmatpush1.msra.mxu0 0.0
    %857 = vmatprep.subr.mxu0 0.0
    %858 = vmatpush1.msra.mxu0 0.0
    %859 = vmatprep.subr.mxu0 0.0
    %860 = vmatpush1.msra.mxu0 0.0
    %861 = vmatprep.subr.mxu0 0.0
    %862 = vmatpush1.msra.mxu0 0.0
    %863 = vmatprep.subr.mxu0 0.0
    %864 = vmatpush1.msra.mxu0 0.0
    %865 = vmatprep.subr.mxu0 0.0
    %866 = vmatpush1.msra.mxu0 0.0
    %867 = vmatprep.subr.mxu0 0.0
    %868 = vmatpush1.msra.mxu0 0.0
    %869 = vmatprep.subr.mxu0 0.0
    %870 = vmatpush1.msra.mxu0 0.0
    %871 = vmatprep.subr.mxu0 0.0
    %872 = vmatpush1.msra.mxu0 0.0
    %873 = vmatprep.subr.mxu0 0.0
    %874 = vmatpush1.msra.mxu0 0.0
    %875 = vmatprep.mubr.f32.mxu0 0.0
    %876 = vmatmul.mubr.f32.gmra.mrb[0].mxu0 %v806
    %v877 = vpop.f32.mrb[0].mxu0
    %v878 = vadd.f32 0.0, %v877
    %v879 = vpop.f32.mrb[0].mxu0
    %880 = vmatprep.mubr.f32.mxu0 0.0
    %881 = vmatmul.mubr.f32.gmra.mrb[0].mxu0 %v809
    %v882 = vpop.f32.mrb[0].mxu0
    %v883 = vadd.f32 0.0, %v882
    %v884 = vpop.f32.mrb[0].mxu0
    %885 = vdwg.mxu0
    %s886 = scalar_lea.vmem %s2, 256
    %v887 = vld [vmem:[%s886] sm:$0xff]
    %v888 = vld [vmem:[%s886 + $0x8] sm:$0xff]
    %v889 = vld [vmem:[%s886 + $0x10] sm:$0xff]
    %v890 = vld [vmem:[%s886 + $0x18] sm:$0xff]
    %v891 = vld [vmem:[%s886 + $0x20] sm:$0xff]
    %v892 = vld [vmem:[%s886 + $0x28] sm:$0xff]
    %v893 = vld [vmem:[%s886 + $0x30] sm:$0xff]
    %v894 = vld [vmem:[%s886 + $0x38] sm:$0xff]
    %v895 = vld [vmem:[%s886 + $0x40] sm:$0xff]
    %v896 = vld [vmem:[%s886 + $0x48] sm:$0xff]
    %v897 = vld [vmem:[%s886 + $0x50] sm:$0xff]
    %v898 = vld [vmem:[%s886 + $0x58] sm:$0xff]
    %v899 = vld [vmem:[%s886 + $0x60] sm:$0xff]
    %v900 = vld [vmem:[%s886 + $0x68] sm:$0xff]
    %v901 = vld [vmem:[%s886 + $0x70] sm:$0xff]
    %v902 = vld [vmem:[%s886 + $0x78] sm:$0xff]
    %903 = vmatprep.subr.mxu0 0.0
    %904 = vmatpush1.msra.mxu0 %v887
    %905 = vmatprep.subr.mxu0 0.0
    %906 = vmatpush1.msra.mxu0 %v888
    %907 = vmatprep.subr.mxu0 0.0
    %908 = vmatpush1.msra.mxu0 %v889
    %909 = vmatprep.subr.mxu0 0.0
    %910 = vmatpush1.msra.mxu0 %v890
    %911 = vmatprep.subr.mxu0 0.0
    %912 = vmatpush1.msra.mxu0 %v891
    %913 = vmatprep.subr.mxu0 0.0
    %914 = vmatpush1.msra.mxu0 %v892
    %915 = vmatprep.subr.mxu0 0.0
    %916 = vmatpush1.msra.mxu0 %v893
    %917 = vmatprep.subr.mxu0 0.0
    %918 = vmatpush1.msra.mxu0 %v894
    %919 = vmatprep.subr.mxu0 0.0
    %920 = vmatpush1.msra.mxu0 %v895
    %921 = vmatprep.subr.mxu0 0.0
    %922 = vmatpush1.msra.mxu0 %v896
    %923 = vmatprep.subr.mxu0 0.0
    %924 = vmatpush1.msra.mxu0 %v897
    %925 = vmatprep.subr.mxu0 0.0
    %926 = vmatpush1.msra.mxu0 %v898
    %927 = vmatprep.subr.mxu0 0.0
    %928 = vmatpush1.msra.mxu0 %v899
    %929 = vmatprep.subr.mxu0 0.0
    %930 = vmatpush1.msra.mxu0 %v900
    %931 = vmatprep.subr.mxu0 0.0
    %932 = vmatpush1.msra.mxu0 %v901
    %933 = vmatprep.subr.mxu0 0.0
    %934 = vmatpush1.msra.mxu0 %v902
    %935 = vmatprep.subr.mxu0 0.0
    %936 = vmatpush1.msra.mxu0 0.0
    %937 = vmatprep.subr.mxu0 0.0
    %938 = vmatpush1.msra.mxu0 0.0
    %939 = vmatprep.subr.mxu0 0.0
    %940 = vmatpush1.msra.mxu0 0.0
    %941 = vmatprep.subr.mxu0 0.0
    %942 = vmatpush1.msra.mxu0 0.0
    %943 = vmatprep.subr.mxu0 0.0
    %944 = vmatpush1.msra.mxu0 0.0
    %945 = vmatprep.subr.mxu0 0.0
    %946 = vmatpush1.msra.mxu0 0.0
    %947 = vmatprep.subr.mxu0 0.0
    %948 = vmatpush1.msra.mxu0 0.0
    %949 = vmatprep.subr.mxu0 0.0
    %950 = vmatpush1.msra.mxu0 0.0
    %951 = vmatprep.subr.mxu0 0.0
    %952 = vmatpush1.msra.mxu0 0.0
    %953 = vmatprep.subr.mxu0 0.0
    %954 = vmatpush1.msra.mxu0 0.0
    %955 = vmatprep.subr.mxu0 0.0
    %956 = vmatpush1.msra.mxu0 0.0
    %957 = vmatprep.subr.mxu0 0.0
    %958 = vmatpush1.msra.mxu0 0.0
    %959 = vmatprep.subr.mxu0 0.0
    %960 = vmatpush1.msra.mxu0 0.0
    %961 = vmatprep.subr.mxu0 0.0
    %962 = vmatpush1.msra.mxu0 0.0
    %963 = vmatprep.subr.mxu0 0.0
    %964 = vmatpush1.msra.mxu0 0.0
    %965 = vmatprep.subr.mxu0 0.0
    %966 = vmatpush1.msra.mxu0 0.0
    %967 = vmatprep.mubr.f32.mxu0 0.0
    %968 = vmatmul.mubr.f32.gmra.mrb[0].mxu0 %v878
    %v969 = vpop.f32.mrb[0].mxu0
    %v970 = vadd.f32 0.0, %v969
    %v971 = vpop.f32.mrb[0].mxu0
    %972 = vmatprep.mubr.f32.mxu0 0.0
    %973 = vmatmul.mubr.f32.gmra.mrb[0].mxu0 %v883
    %v974 = vpop.f32.mrb[0].mxu0
    %v975 = vadd.f32 0.0, %v974
    %v976 = vpop.f32.mrb[0].mxu0
    %977 = vdwg.mxu0
    %v978 = vadd.f32 %v794, %v970
    %v979 = vadd.f32 %v799, %v975
    %v980 = vlaneseq
    %v981 = vshrl.u32 %v980, 7
    %v982 = vsub.s32 0, %v981
    %v983 = vrot.slane %v71, %v982
    %v984 = vadd.f32 %v978, %v983
    %v985 = vadd.f32 %v979, %v983
    %v986 = vmax.f32 %v984, 0.0
    %v987 = vmax.f32 %v985, 0.0
    %988 = vst [vmem:[#allocation2] sm:$0xff] %v986
    %989 = vst [vmem:[#allocation2 + $0x8] sm:$0xff] %v987
    %v990 = vld [vmem:[#allocation2] sm:$0x3]
    %v991 = vld [vmem:[#allocation5] sm:$0xff]
    %v992 = vld [vmem:[#allocation5 + $0x8] sm:$0xff]
    %v993 = vld [vmem:[#allocation5 + $0x10] sm:$0xff]
    %v994 = vld [vmem:[#allocation5 + $0x18] sm:$0xff]
    %v995 = vld [vmem:[#allocation5 + $0x20] sm:$0xff]
    %v996 = vld [vmem:[#allocation5 + $0x28] sm:$0xff]
    %v997 = vld [vmem:[#allocation5 + $0x30] sm:$0xff]
    %v998 = vld [vmem:[#allocation5 + $0x38] sm:$0xff]
    %v999 = vld [vmem:[#allocation5 + $0x40] sm:$0xff]
    %v1000 = vld [vmem:[#allocation5 + $0x48] sm:$0xff]
    %v1001 = vld [vmem:[#allocation5 + $0x50] sm:$0xff]
    %v1002 = vld [vmem:[#allocation5 + $0x58] sm:$0xff]
    %v1003 = vld [vmem:[#allocation5 + $0x60] sm:$0xff]
    %v1004 = vld [vmem:[#allocation5 + $0x68] sm:$0xff]
    %v1005 = vld [vmem:[#allocation5 + $0x70] sm:$0xff]
    %v1006 = vld [vmem:[#allocation5 + $0x78] sm:$0xff]
    %v1007 = vld [vmem:[#allocation2 + $0x2] sm:$0x3]
    %s1008 = scalar_lea.vmem [#allocation5], 128
    %v1009 = vld [vmem:[%s1008] sm:$0xff]
    %v1010 = vld [vmem:[%s1008 + $0x8] sm:$0xff]
    %v1011 = vld [vmem:[%s1008 + $0x10] sm:$0xff]
    %v1012 = vld [vmem:[%s1008 + $0x18] sm:$0xff]
    %v1013 = vld [vmem:[%s1008 + $0x20] sm:$0xff]
    %v1014 = vld [vmem:[%s1008 + $0x28] sm:$0xff]
    %v1015 = vld [vmem:[%s1008 + $0x30] sm:$0xff]
    %v1016 = vld [vmem:[%s1008 + $0x38] sm:$0xff]
    %v1017 = vld [vmem:[%s1008 + $0x40] sm:$0xff]
    %v1018 = vld [vmem:[%s1008 + $0x48] sm:$0xff]
    %v1019 = vld [vmem:[%s1008 + $0x50] sm:$0xff]
    %v1020 = vld [vmem:[%s1008 + $0x58] sm:$0xff]
    %v1021 = vld [vmem:[%s1008 + $0x60] sm:$0xff]
    %v1022 = vld [vmem:[%s1008 + $0x68] sm:$0xff]
    %v1023 = vld [vmem:[%s1008 + $0x70] sm:$0xff]
    %v1024 = vld [vmem:[%s1008 + $0x78] sm:$0xff]
    %1025 = vmatprep.subr.mxu0 0.0
    %1026 = vmatpush1.msra.mxu0 %v1009
    %1027 = vmatprep.subr.mxu0 0.0
    %1028 = vmatpush1.msra.mxu0 %v1010
    %1029 = vmatprep.subr.mxu0 0.0
    %1030 = vmatpush1.msra.mxu0 %v1011
    %1031 = vmatprep.subr.mxu0 0.0
    %1032 = vmatpush1.msra.mxu0 %v1012
    %1033 = vmatprep.subr.mxu0 0.0
    %1034 = vmatpush1.msra.mxu0 %v1013
    %1035 = vmatprep.subr.mxu0 0.0
    %1036 = vmatpush1.msra.mxu0 %v1014
    %1037 = vmatprep.subr.mxu0 0.0
    %1038 = vmatpush1.msra.mxu0 %v1015
    %1039 = vmatprep.subr.mxu0 0.0
    %1040 = vmatpush1.msra.mxu0 %v1016
    %1041 = vmatprep.subr.mxu0 0.0
    %1042 = vmatpush1.msra.mxu0 %v1017
    %1043 = vmatprep.subr.mxu0 0.0
    %1044 = vmatpush1.msra.mxu0 %v1018
    %1045 = vmatprep.subr.mxu0 0.0
    %1046 = vmatpush1.msra.mxu0 %v1019
    %1047 = vmatprep.subr.mxu0 0.0
    %1048 = vmatpush1.msra.mxu0 %v1020
    %1049 = vmatprep.subr.mxu0 0.0
    %1050 = vmatpush1.msra.mxu0 %v1021
    %1051 = vmatprep.subr.mxu0 0.0
    %1052 = vmatpush1.msra.mxu0 %v1022
    %1053 = vmatprep.subr.mxu0 0.0
    %1054 = vmatpush1.msra.mxu0 %v1023
    %1055 = vmatprep.subr.mxu0 0.0
    %1056 = vmatpush1.msra.mxu0 %v1024
    %1057 = vmatprep.subr.mxu0 0.0
    %1058 = vmatpush1.msra.mxu0 0.0
    %1059 = vmatprep.subr.mxu0 0.0
    %1060 = vmatpush1.msra.mxu0 0.0
    %1061 = vmatprep.subr.mxu0 0.0
    %1062 = vmatpush1.msra.mxu0 0.0
    %1063 = vmatprep.subr.mxu0 0.0
    %1064 = vmatpush1.msra.mxu0 0.0
    %1065 = vmatprep.subr.mxu0 0.0
    %1066 = vmatpush1.msra.mxu0 0.0
    %1067 = vmatprep.subr.mxu0 0.0
    %1068 = vmatpush1.msra.mxu0 0.0
    %1069 = vmatprep.subr.mxu0 0.0
    %1070 = vmatpush1.msra.mxu0 0.0
    %1071 = vmatprep.subr.mxu0 0.0
    %1072 = vmatpush1.msra.mxu0 0.0
    %1073 = vmatprep.subr.mxu0 0.0
    %1074 = vmatpush1.msra.mxu0 0.0
    %1075 = vmatprep.subr.mxu0 0.0
    %1076 = vmatpush1.msra.mxu0 0.0
    %1077 = vmatprep.subr.mxu0 0.0
    %1078 = vmatpush1.msra.mxu0 0.0
    %1079 = vmatprep.subr.mxu0 0.0
    %1080 = vmatpush1.msra.mxu0 0.0
    %1081 = vmatprep.subr.mxu0 0.0
    %1082 = vmatpush1.msra.mxu0 0.0
    %1083 = vmatprep.subr.mxu0 0.0
    %1084 = vmatpush1.msra.mxu0 0.0
    %1085 = vmatprep.subr.mxu0 0.0
    %1086 = vmatpush1.msra.mxu0 0.0
    %1087 = vmatprep.subr.mxu0 0.0
    %1088 = vmatpush1.msra.mxu0 0.0
    %1089 = vmatprep.mubr.f32.mxu0 0.0
    %1090 = vmatmul.mubr.f32.gmra.mrb[0].mxu0 %v1007
    %v1091 = vpop.f32.mrb[0].mxu0
    %v1092 = vadd.f32 0.0, %v1091
    %v1093 = vpop.f32.mrb[0].mxu0
    %1094 = vdwg.mxu0
    %1095 = vmatprep.subr.mxu0 0.0
    %1096 = vmatpush1.msra.mxu0 %v991
    %1097 = vmatprep.subr.mxu0 0.0
    %1098 = vmatpush1.msra.mxu0 %v992
    %1099 = vmatprep.subr.mxu0 0.0
    %1100 = vmatpush1.msra.mxu0 %v993
    %1101 = vmatprep.subr.mxu0 0.0
    %1102 = vmatpush1.msra.mxu0 %v994
    %1103 = vmatprep.subr.mxu0 0.0
    %1104 = vmatpush1.msra.mxu0 %v995
    %1105 = vmatprep.subr.mxu0 0.0
    %1106 = vmatpush1.msra.mxu0 %v996
    %1107 = vmatprep.subr.mxu0 0.0
    %1108 = vmatpush1.msra.mxu0 %v997
    %1109 = vmatprep.subr.mxu0 0.0
    %1110 = vmatpush1.msra.mxu0 %v998
    %1111 = vmatprep.subr.mxu0 0.0
    %1112 = vmatpush1.msra.mxu0 %v999
    %1113 = vmatprep.subr.mxu0 0.0
    %1114 = vmatpush1.msra.mxu0 %v1000
    %1115 = vmatprep.subr.mxu0 0.0
    %1116 = vmatpush1.msra.mxu0 %v1001
    %1117 = vmatprep.subr.mxu0 0.0
    %1118 = vmatpush1.msra.mxu0 %v1002
    %1119 = vmatprep.subr.mxu0 0.0
    %1120 = vmatpush1.msra.mxu0 %v1003
    %1121 = vmatprep.subr.mxu0 0.0
    %1122 = vmatpush1.msra.mxu0 %v1004
    %1123 = vmatprep.subr.mxu0 0.0
    %1124 = vmatpush1.msra.mxu0 %v1005
    %1125 = vmatprep.subr.mxu0 0.0
    %1126 = vmatpush1.msra.mxu0 %v1006
    %1127 = vmatprep.subr.mxu0 0.0
    %1128 = vmatpush1.msra.mxu0 0.0
    %1129 = vmatprep.subr.mxu0 0.0
    %1130 = vmatpush1.msra.mxu0 0.0
    %1131 = vmatprep.subr.mxu0 0.0
    %1132 = vmatpush1.msra.mxu0 0.0
    %1133 = vmatprep.subr.mxu0 0.0
    %1134 = vmatpush1.msra.mxu0 0.0
    %1135 = vmatprep.subr.mxu0 0.0
    %1136 = vmatpush1.msra.mxu0 0.0
    %1137 = vmatprep.subr.mxu0 0.0
    %1138 = vmatpush1.msra.mxu0 0.0
    %1139 = vmatprep.subr.mxu0 0.0
    %1140 = vmatpush1.msra.mxu0 0.0
    %1141 = vmatprep.subr.mxu0 0.0
    %1142 = vmatpush1.msra.mxu0 0.0
    %1143 = vmatprep.subr.mxu0 0.0
    %1144 = vmatpush1.msra.mxu0 0.0
    %1145 = vmatprep.subr.mxu0 0.0
    %1146 = vmatpush1.msra.mxu0 0.0
    %1147 = vmatprep.subr.mxu0 0.0
    %1148 = vmatpush1.msra.mxu0 0.0
    %1149 = vmatprep.subr.mxu0 0.0
    %1150 = vmatpush1.msra.mxu0 0.0
    %1151 = vmatprep.subr.mxu0 0.0
    %1152 = vmatpush1.msra.mxu0 0.0
    %1153 = vmatprep.subr.mxu0 0.0
    %1154 = vmatpush1.msra.mxu0 0.0
    %1155 = vmatprep.subr.mxu0 0.0
    %1156 = vmatpush1.msra.mxu0 0.0
    %1157 = vmatprep.subr.mxu0 0.0
    %1158 = vmatpush1.msra.mxu0 0.0
    %1159 = vmatprep.mubr.f32.mxu0 0.0
    %1160 = vmatmul.mubr.f32.gmra.mrb[0].mxu0 %v990
    %v1161 = vpop.f32.mrb[0].mxu0
    %v1162 = vadd.f32 %v1092, %v1161
    %v1163 = vpop.f32.mrb[0].mxu0
    %1164 = vdwg.mxu0
    %v1165 = vld [vmem:[#allocation2 + $0x4] sm:$0x3]
    %s1166 = scalar_lea.vmem [#allocation5], 256
    %v1167 = vld [vmem:[%s1166] sm:$0xff]
    %v1168 = vld [vmem:[%s1166 + $0x8] sm:$0xff]
    %v1169 = vld [vmem:[%s1166 + $0x10] sm:$0xff]
    %v1170 = vld [vmem:[%s1166 + $0x18] sm:$0xff]
    %v1171 = vld [vmem:[%s1166 + $0x20] sm:$0xff]
    %v1172 = vld [vmem:[%s1166 + $0x28] sm:$0xff]
    %v1173 = vld [vmem:[%s1166 + $0x30] sm:$0xff]
    %v1174 = vld [vmem:[%s1166 + $0x38] sm:$0xff]
    %v1175 = vld [vmem:[%s1166 + $0x40] sm:$0xff]
    %v1176 = vld [vmem:[%s1166 + $0x48] sm:$0xff]
    %v1177 = vld [vmem:[%s1166 + $0x50] sm:$0xff]
    %v1178 = vld [vmem:[%s1166 + $0x58] sm:$0xff]
    %v1179 = vld [vmem:[%s1166 + $0x60] sm:$0xff]
    %v1180 = vld [vmem:[%s1166 + $0x68] sm:$0xff]
    %v1181 = vld [vmem:[%s1166 + $0x70] sm:$0xff]
    %v1182 = vld [vmem:[%s1166 + $0x78] sm:$0xff]
    %1183 = vmatprep.subr.mxu0 0.0
    %1184 = vmatpush1.msra.mxu0 %v1167
    %1185 = vmatprep.subr.mxu0 0.0
    %1186 = vmatpush1.msra.mxu0 %v1168
    %1187 = vmatprep.subr.mxu0 0.0
    %1188 = vmatpush1.msra.mxu0 %v1169
    %1189 = vmatprep.subr.mxu0 0.0
    %1190 = vmatpush1.msra.mxu0 %v1170
    %1191 = vmatprep.subr.mxu0 0.0
    %1192 = vmatpush1.msra.mxu0 %v1171
    %1193 = vmatprep.subr.mxu0 0.0
    %1194 = vmatpush1.msra.mxu0 %v1172
    %1195 = vmatprep.subr.mxu0 0.0
    %1196 = vmatpush1.msra.mxu0 %v1173
    %1197 = vmatprep.subr.mxu0 0.0
    %1198 = vmatpush1.msra.mxu0 %v1174
    %1199 = vmatprep.subr.mxu0 0.0
    %1200 = vmatpush1.msra.mxu0 %v1175
    %1201 = vmatprep.subr.mxu0 0.0
    %1202 = vmatpush1.msra.mxu0 %v1176
    %1203 = vmatprep.subr.mxu0 0.0
    %1204 = vmatpush1.msra.mxu0 %v1177
    %1205 = vmatprep.subr.mxu0 0.0
    %1206 = vmatpush1.msra.mxu0 %v1178
    %1207 = vmatprep.subr.mxu0 0.0
    %1208 = vmatpush1.msra.mxu0 %v1179
    %1209 = vmatprep.subr.mxu0 0.0
    %1210 = vmatpush1.msra.mxu0 %v1180
    %1211 = vmatprep.subr.mxu0 0.0
    %1212 = vmatpush1.msra.mxu0 %v1181
    %1213 = vmatprep.subr.mxu0 0.0
    %1214 = vmatpush1.msra.mxu0 %v1182
    %1215 = vmatprep.subr.mxu0 0.0
    %1216 = vmatpush1.msra.mxu0 0.0
    %1217 = vmatprep.subr.mxu0 0.0
    %1218 = vmatpush1.msra.mxu0 0.0
    %1219 = vmatprep.subr.mxu0 0.0
    %1220 = vmatpush1.msra.mxu0 0.0
    %1221 = vmatprep.subr.mxu0 0.0
    %1222 = vmatpush1.msra.mxu0 0.0
    %1223 = vmatprep.subr.mxu0 0.0
    %1224 = vmatpush1.msra.mxu0 0.0
    %1225 = vmatprep.subr.mxu0 0.0
    %1226 = vmatpush1.msra.mxu0 0.0
    %1227 = vmatprep.subr.mxu0 0.0
    %1228 = vmatpush1.msra.mxu0 0.0
    %1229 = vmatprep.subr.mxu0 0.0
    %1230 = vmatpush1.msra.mxu0 0.0
    %1231 = vmatprep.subr.mxu0 0.0
    %1232 = vmatpush1.msra.mxu0 0.0
    %1233 = vmatprep.subr.mxu0 0.0
    %1234 = vmatpush1.msra.mxu0 0.0
    %1235 = vmatprep.subr.mxu0 0.0
    %1236 = vmatpush1.msra.mxu0 0.0
    %1237 = vmatprep.subr.mxu0 0.0
    %1238 = vmatpush1.msra.mxu0 0.0
    %1239 = vmatprep.subr.mxu0 0.0
    %1240 = vmatpush1.msra.mxu0 0.0
    %1241 = vmatprep.subr.mxu0 0.0
    %1242 = vmatpush1.msra.mxu0 0.0
    %1243 = vmatprep.subr.mxu0 0.0
    %1244 = vmatpush1.msra.mxu0 0.0
    %1245 = vmatprep.subr.mxu0 0.0
    %1246 = vmatpush1.msra.mxu0 0.0
    %1247 = vmatprep.mubr.f32.mxu0 0.0
    %1248 = vmatmul.mubr.f32.gmra.mrb[0].mxu0 %v1165
    %v1249 = vpop.f32.mrb[0].mxu0
    %v1250 = vadd.f32 0.0, %v1249
    %v1251 = vpop.f32.mrb[0].mxu0
    %1252 = vdwg.mxu0
    %v1253 = vadd.f32 %v1162, %v1250
    %v1254 = vld [vmem:[#allocation2 + $0x6] sm:$0x3]
    %s1255 = scalar_lea.vmem [#allocation5], 384
    %v1256 = vld [vmem:[%s1255] sm:$0xff]
    %v1257 = vld [vmem:[%s1255 + $0x8] sm:$0xff]
    %v1258 = vld [vmem:[%s1255 + $0x10] sm:$0xff]
    %v1259 = vld [vmem:[%s1255 + $0x18] sm:$0xff]
    %v1260 = vld [vmem:[%s1255 + $0x20] sm:$0xff]
    %v1261 = vld [vmem:[%s1255 + $0x28] sm:$0xff]
    %v1262 = vld [vmem:[%s1255 + $0x30] sm:$0xff]
    %v1263 = vld [vmem:[%s1255 + $0x38] sm:$0xff]
    %v1264 = vld [vmem:[%s1255 + $0x40] sm:$0xff]
    %v1265 = vld [vmem:[%s1255 + $0x48] sm:$0xff]
    %v1266 = vld [vmem:[%s1255 + $0x50] sm:$0xff]
    %v1267 = vld [vmem:[%s1255 + $0x58] sm:$0xff]
    %v1268 = vld [vmem:[%s1255 + $0x60] sm:$0xff]
    %v1269 = vld [vmem:[%s1255 + $0x68] sm:$0xff]
    %v1270 = vld [vmem:[%s1255 + $0x70] sm:$0xff]
    %v1271 = vld [vmem:[%s1255 + $0x78] sm:$0xff]
    %1272 = vmatprep.subr.mxu0 0.0
    %1273 = vmatpush1.msra.mxu0 %v1256
    %1274 = vmatprep.subr.mxu0 0.0
    %1275 = vmatpush1.msra.mxu0 %v1257
    %1276 = vmatprep.subr.mxu0 0.0
    %1277 = vmatpush1.msra.mxu0 %v1258
    %1278 = vmatprep.subr.mxu0 0.0
    %1279 = vmatpush1.msra.mxu0 %v1259
    %1280 = vmatprep.subr.mxu0 0.0
    %1281 = vmatpush1.msra.mxu0 %v1260
    %1282 = vmatprep.subr.mxu0 0.0
    %1283 = vmatpush1.msra.mxu0 %v1261
    %1284 = vmatprep.subr.mxu0 0.0
    %1285 = vmatpush1.msra.mxu0 %v1262
    %1286 = vmatprep.subr.mxu0 0.0
    %1287 = vmatpush1.msra.mxu0 %v1263
    %1288 = vmatprep.subr.mxu0 0.0
    %1289 = vmatpush1.msra.mxu0 %v1264
    %1290 = vmatprep.subr.mxu0 0.0
    %1291 = vmatpush1.msra.mxu0 %v1265
    %1292 = vmatprep.subr.mxu0 0.0
    %1293 = vmatpush1.msra.mxu0 %v1266
    %1294 = vmatprep.subr.mxu0 0.0
    %1295 = vmatpush1.msra.mxu0 %v1267
    %1296 = vmatprep.subr.mxu0 0.0
    %1297 = vmatpush1.msra.mxu0 %v1268
    %1298 = vmatprep.subr.mxu0 0.0
    %1299 = vmatpush1.msra.mxu0 %v1269
    %1300 = vmatprep.subr.mxu0 0.0
    %1301 = vmatpush1.msra.mxu0 %v1270
    %1302 = vmatprep.subr.mxu0 0.0
    %1303 = vmatpush1.msra.mxu0 %v1271
    %1304 = vmatprep.subr.mxu0 0.0
    %1305 = vmatpush1.msra.mxu0 0.0
    %1306 = vmatprep.subr.mxu0 0.0
    %1307 = vmatpush1.msra.mxu0 0.0
    %1308 = vmatprep.subr.mxu0 0.0
    %1309 = vmatpush1.msra.mxu0 0.0
    %1310 = vmatprep.subr.mxu0 0.0
    %1311 = vmatpush1.msra.mxu0 0.0
    %1312 = vmatprep.subr.mxu0 0.0
    %1313 = vmatpush1.msra.mxu0 0.0
    %1314 = vmatprep.subr.mxu0 0.0
    %1315 = vmatpush1.msra.mxu0 0.0
    %1316 = vmatprep.subr.mxu0 0.0
    %1317 = vmatpush1.msra.mxu0 0.0
    %1318 = vmatprep.subr.mxu0 0.0
    %1319 = vmatpush1.msra.mxu0 0.0
    %1320 = vmatprep.subr.mxu0 0.0
    %1321 = vmatpush1.msra.mxu0 0.0
    %1322 = vmatprep.subr.mxu0 0.0
    %1323 = vmatpush1.msra.mxu0 0.0
    %1324 = vmatprep.subr.mxu0 0.0
    %1325 = vmatpush1.msra.mxu0 0.0
    %1326 = vmatprep.subr.mxu0 0.0
    %1327 = vmatpush1.msra.mxu0 0.0
    %1328 = vmatprep.subr.mxu0 0.0
    %1329 = vmatpush1.msra.mxu0 0.0
    %1330 = vmatprep.subr.mxu0 0.0
    %1331 = vmatpush1.msra.mxu0 0.0
    %1332 = vmatprep.subr.mxu0 0.0
    %1333 = vmatpush1.msra.mxu0 0.0
    %1334 = vmatprep.subr.mxu0 0.0
    %1335 = vmatpush1.msra.mxu0 0.0
    %1336 = vmatprep.mubr.f32.mxu0 0.0
    %1337 = vmatmul.mubr.f32.gmra.mrb[0].mxu0 %v1254
    %v1338 = vpop.f32.mrb[0].mxu0
    %v1339 = vadd.f32 0.0, %v1338
    %v1340 = vpop.f32.mrb[0].mxu0
    %1341 = vdwg.mxu0
    %v1342 = vadd.f32 %v1253, %v1339
    %v1343 = vld [vmem:[#allocation2 + $0x8] sm:$0x3]
    %s1344 = scalar_lea.vmem [#allocation5], 512
    %v1345 = vld [vmem:[%s1344] sm:$0xff]
    %v1346 = vld [vmem:[%s1344 + $0x8] sm:$0xff]
    %v1347 = vld [vmem:[%s1344 + $0x10] sm:$0xff]
    %v1348 = vld [vmem:[%s1344 + $0x18] sm:$0xff]
    %v1349 = vld [vmem:[%s1344 + $0x20] sm:$0xff]
    %v1350 = vld [vmem:[%s1344 + $0x28] sm:$0xff]
    %v1351 = vld [vmem:[%s1344 + $0x30] sm:$0xff]
    %v1352 = vld [vmem:[%s1344 + $0x38] sm:$0xff]
    %v1353 = vld [vmem:[%s1344 + $0x40] sm:$0xff]
    %v1354 = vld [vmem:[%s1344 + $0x48] sm:$0xff]
    %v1355 = vld [vmem:[%s1344 + $0x50] sm:$0xff]
    %v1356 = vld [vmem:[%s1344 + $0x58] sm:$0xff]
    %v1357 = vld [vmem:[%s1344 + $0x60] sm:$0xff]
    %v1358 = vld [vmem:[%s1344 + $0x68] sm:$0xff]
    %v1359 = vld [vmem:[%s1344 + $0x70] sm:$0xff]
    %v1360 = vld [vmem:[%s1344 + $0x78] sm:$0xff]
    %1361 = vmatprep.subr.mxu0 0.0
    %1362 = vmatpush1.msra.mxu0 %v1345
    %1363 = vmatprep.subr.mxu0 0.0
    %1364 = vmatpush1.msra.mxu0 %v1346
    %1365 = vmatprep.subr.mxu0 0.0
    %1366 = vmatpush1.msra.mxu0 %v1347
    %1367 = vmatprep.subr.mxu0 0.0
    %1368 = vmatpush1.msra.mxu0 %v1348
    %1369 = vmatprep.subr.mxu0 0.0
    %1370 = vmatpush1.msra.mxu0 %v1349
    %1371 = vmatprep.subr.mxu0 0.0
    %1372 = vmatpush1.msra.mxu0 %v1350
    %1373 = vmatprep.subr.mxu0 0.0
    %1374 = vmatpush1.msra.mxu0 %v1351
    %1375 = vmatprep.subr.mxu0 0.0
    %1376 = vmatpush1.msra.mxu0 %v1352
    %1377 = vmatprep.subr.mxu0 0.0
    %1378 = vmatpush1.msra.mxu0 %v1353
    %1379 = vmatprep.subr.mxu0 0.0
    %1380 = vmatpush1.msra.mxu0 %v1354
    %1381 = vmatprep.subr.mxu0 0.0
    %1382 = vmatpush1.msra.mxu0 %v1355
    %1383 = vmatprep.subr.mxu0 0.0
    %1384 = vmatpush1.msra.mxu0 %v1356
    %1385 = vmatprep.subr.mxu0 0.0
    %1386 = vmatpush1.msra.mxu0 %v1357
    %1387 = vmatprep.subr.mxu0 0.0
    %1388 = vmatpush1.msra.mxu0 %v1358
    %1389 = vmatprep.subr.mxu0 0.0
    %1390 = vmatpush1.msra.mxu0 %v1359
    %1391 = vmatprep.subr.mxu0 0.0
    %1392 = vmatpush1.msra.mxu0 %v1360
    %1393 = vmatprep.subr.mxu0 0.0
    %1394 = vmatpush1.msra.mxu0 0.0
    %1395 = vmatprep.subr.mxu0 0.0
    %1396 = vmatpush1.msra.mxu0 0.0
    %1397 = vmatprep.subr.mxu0 0.0
    %1398 = vmatpush1.msra.mxu0 0.0
    %1399 = vmatprep.subr.mxu0 0.0
    %1400 = vmatpush1.msra.mxu0 0.0
    %1401 = vmatprep.subr.mxu0 0.0
    %1402 = vmatpush1.msra.mxu0 0.0
    %1403 = vmatprep.subr.mxu0 0.0
    %1404 = vmatpush1.msra.mxu0 0.0
    %1405 = vmatprep.subr.mxu0 0.0
    %1406 = vmatpush1.msra.mxu0 0.0
    %1407 = vmatprep.subr.mxu0 0.0
    %1408 = vmatpush1.msra.mxu0 0.0
    %1409 = vmatprep.subr.mxu0 0.0
    %1410 = vmatpush1.msra.mxu0 0.0
    %1411 = vmatprep.subr.mxu0 0.0
    %1412 = vmatpush1.msra.mxu0 0.0
    %1413 = vmatprep.subr.mxu0 0.0
    %1414 = vmatpush1.msra.mxu0 0.0
    %1415 = vmatprep.subr.mxu0 0.0
    %1416 = vmatpush1.msra.mxu0 0.0
    %1417 = vmatprep.subr.mxu0 0.0
    %1418 = vmatpush1.msra.mxu0 0.0
    %1419 = vmatprep.subr.mxu0 0.0
    %1420 = vmatpush1.msra.mxu0 0.0
    %1421 = vmatprep.subr.mxu0 0.0
    %1422 = vmatpush1.msra.mxu0 0.0
    %1423 = vmatprep.subr.mxu0 0.0
    %1424 = vmatpush1.msra.mxu0 0.0
    %1425 = vmatprep.mubr.f32.mxu0 0.0
    %1426 = vmatmul.mubr.f32.gmra.mrb[0].mxu0 %v1343
    %v1427 = vpop.f32.mrb[0].mxu0
    %v1428 = vadd.f32 0.0, %v1427
    %v1429 = vpop.f32.mrb[0].mxu0
    %1430 = vdwg.mxu0
    %v1431 = vadd.f32 %v1342, %v1428
    %v1432 = vld [vmem:[#allocation2 + $0xa] sm:$0x3]
    %s1433 = scalar_lea.vmem [#allocation5], 640
    %v1434 = vld [vmem:[%s1433] sm:$0xff]
    %v1435 = vld [vmem:[%s1433 + $0x8] sm:$0xff]
    %v1436 = vld [vmem:[%s1433 + $0x10] sm:$0xff]
    %v1437 = vld [vmem:[%s1433 + $0x18] sm:$0xff]
    %v1438 = vld [vmem:[%s1433 + $0x20] sm:$0xff]
    %v1439 = vld [vmem:[%s1433 + $0x28] sm:$0xff]
    %v1440 = vld [vmem:[%s1433 + $0x30] sm:$0xff]
    %v1441 = vld [vmem:[%s1433 + $0x38] sm:$0xff]
    %v1442 = vld [vmem:[%s1433 + $0x40] sm:$0xff]
    %v1443 = vld [vmem:[%s1433 + $0x48] sm:$0xff]
    %v1444 = vld [vmem:[%s1433 + $0x50] sm:$0xff]
    %v1445 = vld [vmem:[%s1433 + $0x58] sm:$0xff]
    %v1446 = vld [vmem:[%s1433 + $0x60] sm:$0xff]
    %v1447 = vld [vmem:[%s1433 + $0x68] sm:$0xff]
    %v1448 = vld [vmem:[%s1433 + $0x70] sm:$0xff]
    %v1449 = vld [vmem:[%s1433 + $0x78] sm:$0xff]
    %1450 = vmatprep.subr.mxu0 0.0
    %1451 = vmatpush1.msra.mxu0 %v1434
    %1452 = vmatprep.subr.mxu0 0.0
    %1453 = vmatpush1.msra.mxu0 %v1435
    %1454 = vmatprep.subr.mxu0 0.0
    %1455 = vmatpush1.msra.mxu0 %v1436
    %1456 = vmatprep.subr.mxu0 0.0
    %1457 = vmatpush1.msra.mxu0 %v1437
    %1458 = vmatprep.subr.mxu0 0.0
    %1459 = vmatpush1.msra.mxu0 %v1438
    %1460 = vmatprep.subr.mxu0 0.0
    %1461 = vmatpush1.msra.mxu0 %v1439
    %1462 = vmatprep.subr.mxu0 0.0
    %1463 = vmatpush1.msra.mxu0 %v1440
    %1464 = vmatprep.subr.mxu0 0.0
    %1465 = vmatpush1.msra.mxu0 %v1441
    %1466 = vmatprep.subr.mxu0 0.0
    %1467 = vmatpush1.msra.mxu0 %v1442
    %1468 = vmatprep.subr.mxu0 0.0
    %1469 = vmatpush1.msra.mxu0 %v1443
    %1470 = vmatprep.subr.mxu0 0.0
    %1471 = vmatpush1.msra.mxu0 %v1444
    %1472 = vmatprep.subr.mxu0 0.0
    %1473 = vmatpush1.msra.mxu0 %v1445
    %1474 = vmatprep.subr.mxu0 0.0
    %1475 = vmatpush1.msra.mxu0 %v1446
    %1476 = vmatprep.subr.mxu0 0.0
    %1477 = vmatpush1.msra.mxu0 %v1447
    %1478 = vmatprep.subr.mxu0 0.0
    %1479 = vmatpush1.msra.mxu0 %v1448
    %1480 = vmatprep.subr.mxu0 0.0
    %1481 = vmatpush1.msra.mxu0 %v1449
    %1482 = vmatprep.subr.mxu0 0.0
    %1483 = vmatpush1.msra.mxu0 0.0
    %1484 = vmatprep.subr.mxu0 0.0
    %1485 = vmatpush1.msra.mxu0 0.0
    %1486 = vmatprep.subr.mxu0 0.0
    %1487 = vmatpush1.msra.mxu0 0.0
    %1488 = vmatprep.subr.mxu0 0.0
    %1489 = vmatpush1.msra.mxu0 0.0
    %1490 = vmatprep.subr.mxu0 0.0
    %1491 = vmatpush1.msra.mxu0 0.0
    %1492 = vmatprep.subr.mxu0 0.0
    %1493 = vmatpush1.msra.mxu0 0.0
    %1494 = vmatprep.subr.mxu0 0.0
    %1495 = vmatpush1.msra.mxu0 0.0
    %1496 = vmatprep.subr.mxu0 0.0
    %1497 = vmatpush1.msra.mxu0 0.0
    %1498 = vmatprep.subr.mxu0 0.0
    %1499 = vmatpush1.msra.mxu0 0.0
    %1500 = vmatprep.subr.mxu0 0.0
    %1501 = vmatpush1.msra.mxu0 0.0
    %1502 = vmatprep.subr.mxu0 0.0
    %1503 = vmatpush1.msra.mxu0 0.0
    %1504 = vmatprep.subr.mxu0 0.0
    %1505 = vmatpush1.msra.mxu0 0.0
    %1506 = vmatprep.subr.mxu0 0.0
    %1507 = vmatpush1.msra.mxu0 0.0
    %1508 = vmatprep.subr.mxu0 0.0
    %1509 = vmatpush1.msra.mxu0 0.0
    %1510 = vmatprep.subr.mxu0 0.0
    %1511 = vmatpush1.msra.mxu0 0.0
    %1512 = vmatprep.subr.mxu0 0.0
    %1513 = vmatpush1.msra.mxu0 0.0
    %1514 = vmatprep.mubr.f32.mxu0 0.0
    %1515 = vmatmul.mubr.f32.gmra.mrb[0].mxu0 %v1432
    %v1516 = vpop.f32.mrb[0].mxu0
    %v1517 = vadd.f32 0.0, %v1516
    %v1518 = vpop.f32.mrb[0].mxu0
    %1519 = vdwg.mxu0
    %v1520 = vadd.f32 %v1431, %v1517
    %v1521 = vld [vmem:[#allocation2 + $0xc] sm:$0x3]
    %s1522 = scalar_lea.vmem [#allocation5], 768
    %v1523 = vld [vmem:[%s1522] sm:$0xff]
    %v1524 = vld [vmem:[%s1522 + $0x8] sm:$0xff]
    %v1525 = vld [vmem:[%s1522 + $0x10] sm:$0xff]
    %v1526 = vld [vmem:[%s1522 + $0x18] sm:$0xff]
    %v1527 = vld [vmem:[%s1522 + $0x20] sm:$0xff]
    %v1528 = vld [vmem:[%s1522 + $0x28] sm:$0xff]
    %v1529 = vld [vmem:[%s1522 + $0x30] sm:$0xff]
    %v1530 = vld [vmem:[%s1522 + $0x38] sm:$0xff]
    %v1531 = vld [vmem:[%s1522 + $0x40] sm:$0xff]
    %v1532 = vld [vmem:[%s1522 + $0x48] sm:$0xff]
    %v1533 = vld [vmem:[%s1522 + $0x50] sm:$0xff]
    %v1534 = vld [vmem:[%s1522 + $0x58] sm:$0xff]
    %v1535 = vld [vmem:[%s1522 + $0x60] sm:$0xff]
    %v1536 = vld [vmem:[%s1522 + $0x68] sm:$0xff]
    %v1537 = vld [vmem:[%s1522 + $0x70] sm:$0xff]
    %v1538 = vld [vmem:[%s1522 + $0x78] sm:$0xff]
    %1539 = vmatprep.subr.mxu0 0.0
    %1540 = vmatpush1.msra.mxu0 %v1523
    %1541 = vmatprep.subr.mxu0 0.0
    %1542 = vmatpush1.msra.mxu0 %v1524
    %1543 = vmatprep.subr.mxu0 0.0
    %1544 = vmatpush1.msra.mxu0 %v1525
    %1545 = vmatprep.subr.mxu0 0.0
    %1546 = vmatpush1.msra.mxu0 %v1526
    %1547 = vmatprep.subr.mxu0 0.0
    %1548 = vmatpush1.msra.mxu0 %v1527
    %1549 = vmatprep.subr.mxu0 0.0
    %1550 = vmatpush1.msra.mxu0 %v1528
    %1551 = vmatprep.subr.mxu0 0.0
    %1552 = vmatpush1.msra.mxu0 %v1529
    %1553 = vmatprep.subr.mxu0 0.0
    %1554 = vmatpush1.msra.mxu0 %v1530
    %1555 = vmatprep.subr.mxu0 0.0
    %1556 = vmatpush1.msra.mxu0 %v1531
    %1557 = vmatprep.subr.mxu0 0.0
    %1558 = vmatpush1.msra.mxu0 %v1532
    %1559 = vmatprep.subr.mxu0 0.0
    %1560 = vmatpush1.msra.mxu0 %v1533
    %1561 = vmatprep.subr.mxu0 0.0
    %1562 = vmatpush1.msra.mxu0 %v1534
    %1563 = vmatprep.subr.mxu0 0.0
    %1564 = vmatpush1.msra.mxu0 %v1535
    %1565 = vmatprep.subr.mxu0 0.0
    %1566 = vmatpush1.msra.mxu0 %v1536
    %1567 = vmatprep.subr.mxu0 0.0
    %1568 = vmatpush1.msra.mxu0 %v1537
    %1569 = vmatprep.subr.mxu0 0.0
    %1570 = vmatpush1.msra.mxu0 %v1538
    %1571 = vmatprep.subr.mxu0 0.0
    %1572 = vmatpush1.msra.mxu0 0.0
    %1573 = vmatprep.subr.mxu0 0.0
    %1574 = vmatpush1.msra.mxu0 0.0
    %1575 = vmatprep.subr.mxu0 0.0
    %1576 = vmatpush1.msra.mxu0 0.0
    %1577 = vmatprep.subr.mxu0 0.0
    %1578 = vmatpush1.msra.mxu0 0.0
    %1579 = vmatprep.subr.mxu0 0.0
    %1580 = vmatpush1.msra.mxu0 0.0
    %1581 = vmatprep.subr.mxu0 0.0
    %1582 = vmatpush1.msra.mxu0 0.0
    %1583 = vmatprep.subr.mxu0 0.0
    %1584 = vmatpush1.msra.mxu0 0.0
    %1585 = vmatprep.subr.mxu0 0.0
    %1586 = vmatpush1.msra.mxu0 0.0
    %1587 = vmatprep.subr.mxu0 0.0
    %1588 = vmatpush1.msra.mxu0 0.0
    %1589 = vmatprep.subr.mxu0 0.0
    %1590 = vmatpush1.msra.mxu0 0.0
    %1591 = vmatprep.subr.mxu0 0.0
    %1592 = vmatpush1.msra.mxu0 0.0
    %1593 = vmatprep.subr.mxu0 0.0
    %1594 = vmatpush1.msra.mxu0 0.0
    %1595 = vmatprep.subr.mxu0 0.0
    %1596 = vmatpush1.msra.mxu0 0.0
    %1597 = vmatprep.subr.mxu0 0.0
    %1598 = vmatpush1.msra.mxu0 0.0
    %1599 = vmatprep.subr.mxu0 0.0
    %1600 = vmatpush1.msra.mxu0 0.0
    %1601 = vmatprep.subr.mxu0 0.0
    %1602 = vmatpush1.msra.mxu0 0.0
    %1603 = vmatprep.mubr.f32.mxu0 0.0
    %1604 = vmatmul.mubr.f32.gmra.mrb[0].mxu0 %v1521
    %v1605 = vpop.f32.mrb[0].mxu0
    %v1606 = vadd.f32 0.0, %v1605
    %v1607 = vpop.f32.mrb[0].mxu0
    %1608 = vdwg.mxu0
    %v1609 = vadd.f32 %v1520, %v1606
    %v1610 = vld [vmem:[#allocation2 + $0xe] sm:$0x3]
    %s1611 = scalar_lea.vmem [#allocation5], 896
    %v1612 = vld [vmem:[%s1611] sm:$0xff]
    %v1613 = vld [vmem:[%s1611 + $0x8] sm:$0xff]
    %v1614 = vld [vmem:[%s1611 + $0x10] sm:$0xff]
    %v1615 = vld [vmem:[%s1611 + $0x18] sm:$0xff]
    %v1616 = vld [vmem:[%s1611 + $0x20] sm:$0xff]
    %v1617 = vld [vmem:[%s1611 + $0x28] sm:$0xff]
    %v1618 = vld [vmem:[%s1611 + $0x30] sm:$0xff]
    %v1619 = vld [vmem:[%s1611 + $0x38] sm:$0xff]
    %v1620 = vld [vmem:[%s1611 + $0x40] sm:$0xff]
    %v1621 = vld [vmem:[%s1611 + $0x48] sm:$0xff]
    %v1622 = vld [vmem:[%s1611 + $0x50] sm:$0xff]
    %v1623 = vld [vmem:[%s1611 + $0x58] sm:$0xff]
    %v1624 = vld [vmem:[%s1611 + $0x60] sm:$0xff]
    %v1625 = vld [vmem:[%s1611 + $0x68] sm:$0xff]
    %v1626 = vld [vmem:[%s1611 + $0x70] sm:$0xff]
    %v1627 = vld [vmem:[%s1611 + $0x78] sm:$0xff]
    %1628 = vmatprep.subr.mxu0 0.0
    %1629 = vmatpush1.msra.mxu0 %v1612
    %1630 = vmatprep.subr.mxu0 0.0
    %1631 = vmatpush1.msra.mxu0 %v1613
    %1632 = vmatprep.subr.mxu0 0.0
    %1633 = vmatpush1.msra.mxu0 %v1614
    %1634 = vmatprep.subr.mxu0 0.0
    %1635 = vmatpush1.msra.mxu0 %v1615
    %1636 = vmatprep.subr.mxu0 0.0
    %1637 = vmatpush1.msra.mxu0 %v1616
    %1638 = vmatprep.subr.mxu0 0.0
    %1639 = vmatpush1.msra.mxu0 %v1617
    %1640 = vmatprep.subr.mxu0 0.0
    %1641 = vmatpush1.msra.mxu0 %v1618
    %1642 = vmatprep.subr.mxu0 0.0
    %1643 = vmatpush1.msra.mxu0 %v1619
    %1644 = vmatprep.subr.mxu0 0.0
    %1645 = vmatpush1.msra.mxu0 %v1620
    %1646 = vmatprep.subr.mxu0 0.0
    %1647 = vmatpush1.msra.mxu0 %v1621
    %1648 = vmatprep.subr.mxu0 0.0
    %1649 = vmatpush1.msra.mxu0 %v1622
    %1650 = vmatprep.subr.mxu0 0.0
    %1651 = vmatpush1.msra.mxu0 %v1623
    %1652 = vmatprep.subr.mxu0 0.0
    %1653 = vmatpush1.msra.mxu0 %v1624
    %1654 = vmatprep.subr.mxu0 0.0
    %1655 = vmatpush1.msra.mxu0 %v1625
    %1656 = vmatprep.subr.mxu0 0.0
    %1657 = vmatpush1.msra.mxu0 %v1626
    %1658 = vmatprep.subr.mxu0 0.0
    %1659 = vmatpush1.msra.mxu0 %v1627
    %1660 = vmatprep.subr.mxu0 0.0
    %1661 = vmatpush1.msra.mxu0 0.0
    %1662 = vmatprep.subr.mxu0 0.0
    %1663 = vmatpush1.msra.mxu0 0.0
    %1664 = vmatprep.subr.mxu0 0.0
    %1665 = vmatpush1.msra.mxu0 0.0
    %1666 = vmatprep.subr.mxu0 0.0
    %1667 = vmatpush1.msra.mxu0 0.0
    %1668 = vmatprep.subr.mxu0 0.0
    %1669 = vmatpush1.msra.mxu0 0.0
    %1670 = vmatprep.subr.mxu0 0.0
    %1671 = vmatpush1.msra.mxu0 0.0
    %1672 = vmatprep.subr.mxu0 0.0
    %1673 = vmatpush1.msra.mxu0 0.0
    %1674 = vmatprep.subr.mxu0 0.0
    %1675 = vmatpush1.msra.mxu0 0.0
    %1676 = vmatprep.subr.mxu0 0.0
    %1677 = vmatpush1.msra.mxu0 0.0
    %1678 = vmatprep.subr.mxu0 0.0
    %1679 = vmatpush1.msra.mxu0 0.0
    %1680 = vmatprep.subr.mxu0 0.0
    %1681 = vmatpush1.msra.mxu0 0.0
    %1682 = vmatprep.subr.mxu0 0.0
    %1683 = vmatpush1.msra.mxu0 0.0
    %1684 = vmatprep.subr.mxu0 0.0
    %1685 = vmatpush1.msra.mxu0 0.0
    %1686 = vmatprep.subr.mxu0 0.0
    %1687 = vmatpush1.msra.mxu0 0.0
    %1688 = vmatprep.subr.mxu0 0.0
    %1689 = vmatpush1.msra.mxu0 0.0
    %1690 = vmatprep.subr.mxu0 0.0
    %1691 = vmatpush1.msra.mxu0 0.0
    %1692 = vmatprep.mubr.f32.mxu0 0.0
    %1693 = vmatmul.mubr.f32.gmra.mrb[0].mxu0 %v1610
    %v1694 = vpop.f32.mrb[0].mxu0
    %v1695 = vadd.f32 0.0, %v1694
    %v1696 = vpop.f32.mrb[0].mxu0
    %1697 = vdwg.mxu0
    %v1698 = vadd.f32 %v1609, %v1695
    %v1699 = vlaneseq
    %v1700 = vshrl.u32 %v1699, 7
    %v1701 = vsub.s32 0, %v1700
    %v1702 = vrot.slane %v72, %v1701
    %v1703 = vadd.f32 %v1698, %v1702
    %v1704 = vmax.f32 %v1703, 0.0
    %v1705 = vld [vmem:[#allocation7] sm:$0xff]
    %v1706 = vld [vmem:[#allocation7 + $0x8] sm:$0xff]
    %v1707 = vld [vmem:[#allocation7 + $0x10] sm:$0xff]
    %v1708 = vld [vmem:[#allocation7 + $0x18] sm:$0xff]
    %v1709 = vld [vmem:[#allocation7 + $0x20] sm:$0xff]
    %v1710 = vld [vmem:[#allocation7 + $0x28] sm:$0xff]
    %v1711 = vld [vmem:[#allocation7 + $0x30] sm:$0xff]
    %v1712 = vld [vmem:[#allocation7 + $0x38] sm:$0xff]
    %v1713 = vld [vmem:[#allocation7 + $0x40] sm:$0xff]
    %v1714 = vld [vmem:[#allocation7 + $0x48] sm:$0xff]
    %v1715 = vld [vmem:[#allocation7 + $0x50] sm:$0xff]
    %v1716 = vld [vmem:[#allocation7 + $0x58] sm:$0xff]
    %v1717 = vld [vmem:[#allocation7 + $0x60] sm:$0xff]
    %v1718 = vld [vmem:[#allocation7 + $0x68] sm:$0xff]
    %v1719 = vld [vmem:[#allocation7 + $0x70] sm:$0xff]
    %v1720 = vld [vmem:[#allocation7 + $0x78] sm:$0xff]
    %v1721 = vlaneseq
    %v1722 = vshrl.u32 %v1721, 7
    %v1723 = vsub.s32 0, %v1722
    %v1724 = vrot.slane %v73, %v1723
    %1725 = vmatprep.subr.mxu0 0.0
    %1726 = vmatpush1.msra.mxu0 %v1705
    %1727 = vmatprep.subr.mxu0 0.0
    %1728 = vmatpush1.msra.mxu0 %v1706
    %1729 = vmatprep.subr.mxu0 0.0
    %1730 = vmatpush1.msra.mxu0 %v1707
    %1731 = vmatprep.subr.mxu0 0.0
    %1732 = vmatpush1.msra.mxu0 %v1708
    %1733 = vmatprep.subr.mxu0 0.0
    %1734 = vmatpush1.msra.mxu0 %v1709
    %1735 = vmatprep.subr.mxu0 0.0
    %1736 = vmatpush1.msra.mxu0 %v1710
    %1737 = vmatprep.subr.mxu0 0.0
    %1738 = vmatpush1.msra.mxu0 %v1711
    %1739 = vmatprep.subr.mxu0 0.0
    %1740 = vmatpush1.msra.mxu0 %v1712
    %1741 = vmatprep.subr.mxu0 0.0
    %1742 = vmatpush1.msra.mxu0 %v1713
    %1743 = vmatprep.subr.mxu0 0.0
    %1744 = vmatpush1.msra.mxu0 %v1714
    %1745 = vmatprep.subr.mxu0 0.0
    %1746 = vmatpush1.msra.mxu0 %v1715
    %1747 = vmatprep.subr.mxu0 0.0
    %1748 = vmatpush1.msra.mxu0 %v1716
    %1749 = vmatprep.subr.mxu0 0.0
    %1750 = vmatpush1.msra.mxu0 %v1717
    %1751 = vmatprep.subr.mxu0 0.0
    %1752 = vmatpush1.msra.mxu0 %v1718
    %1753 = vmatprep.subr.mxu0 0.0
    %1754 = vmatpush1.msra.mxu0 %v1719
    %1755 = vmatprep.subr.mxu0 0.0
    %1756 = vmatpush1.msra.mxu0 %v1720
    %1757 = vmatprep.subr.mxu0 0.0
    %1758 = vmatpush1.msra.mxu0 0.0
    %1759 = vmatprep.subr.mxu0 0.0
    %1760 = vmatpush1.msra.mxu0 0.0
    %1761 = vmatprep.subr.mxu0 0.0
    %1762 = vmatpush1.msra.mxu0 0.0
    %1763 = vmatprep.subr.mxu0 0.0
    %1764 = vmatpush1.msra.mxu0 0.0
    %1765 = vmatprep.subr.mxu0 0.0
    %1766 = vmatpush1.msra.mxu0 0.0
    %1767 = vmatprep.subr.mxu0 0.0
    %1768 = vmatpush1.msra.mxu0 0.0
    %1769 = vmatprep.subr.mxu0 0.0
    %1770 = vmatpush1.msra.mxu0 0.0
    %1771 = vmatprep.subr.mxu0 0.0
    %1772 = vmatpush1.msra.mxu0 0.0
    %1773 = vmatprep.subr.mxu0 0.0
    %1774 = vmatpush1.msra.mxu0 0.0
    %1775 = vmatprep.subr.mxu0 0.0
    %1776 = vmatpush1.msra.mxu0 0.0
    %1777 = vmatprep.subr.mxu0 0.0
    %1778 = vmatpush1.msra.mxu0 0.0
    %1779 = vmatprep.subr.mxu0 0.0
    %1780 = vmatpush1.msra.mxu0 0.0
    %1781 = vmatprep.subr.mxu0 0.0
    %1782 = vmatpush1.msra.mxu0 0.0
    %1783 = vmatprep.subr.mxu0 0.0
    %1784 = vmatpush1.msra.mxu0 0.0
    %1785 = vmatprep.subr.mxu0 0.0
    %1786 = vmatpush1.msra.mxu0 0.0
    %1787 = vmatprep.subr.mxu0 0.0
    %1788 = vmatpush1.msra.mxu0 0.0
    %1789 = vmatprep.mubr.f32.mxu0 0.0
    %1790 = vmatmul.mubr.f32.gmra.mrb[0].mxu0 %v1704
    %v1791 = vpop.f32.mrb[0].mxu0
    %v1792 = vadd.f32 %v1724, %v1791
    %v1793 = vpop.f32.mrb[0].mxu0
    %1794 = vdwg.mxu0
    %v1795 = vtanh.pop %v1792
    %s1796 = scalar_lea.vmem [#allocation7], 128
    %v1797 = vld [vmem:[%s1796] sm:$0xff]
    %v1798 = vld [vmem:[%s1796 + $0x8] sm:$0xff]
    %v1799 = vld [vmem:[%s1796 + $0x10] sm:$0xff]
    %v1800 = vld [vmem:[%s1796 + $0x18] sm:$0xff]
    %v1801 = vld [vmem:[%s1796 + $0x20] sm:$0xff]
    %v1802 = vld [vmem:[%s1796 + $0x28] sm:$0xff]
    %v1803 = vld [vmem:[%s1796 + $0x30] sm:$0xff]
    %v1804 = vld [vmem:[%s1796 + $0x38] sm:$0xff]
    %v1805 = vld [vmem:[%s1796 + $0x40] sm:$0xff]
    %v1806 = vld [vmem:[%s1796 + $0x48] sm:$0xff]
    %v1807 = vld [vmem:[%s1796 + $0x50] sm:$0xff]
    %v1808 = vld [vmem:[%s1796 + $0x58] sm:$0xff]
    %v1809 = vld [vmem:[%s1796 + $0x60] sm:$0xff]
    %v1810 = vld [vmem:[%s1796 + $0x68] sm:$0xff]
    %v1811 = vld [vmem:[%s1796 + $0x70] sm:$0xff]
    %v1812 = vld [vmem:[%s1796 + $0x78] sm:$0xff]
    %v1813 = vlaneseq
    %v1814 = vshrl.u32 %v1813, 7
    %v1815 = vsub.s32 0, %v1814
    %v1816 = vrot.slane %v74, %v1815
    %1817 = vmatprep.subr.mxu0 0.0
    %1818 = vmatpush1.msra.mxu0 %v1797
    %1819 = vmatprep.subr.mxu0 0.0
    %1820 = vmatpush1.msra.mxu0 %v1798
    %1821 = vmatprep.subr.mxu0 0.0
    %1822 = vmatpush1.msra.mxu0 %v1799
    %1823 = vmatprep.subr.mxu0 0.0
    %1824 = vmatpush1.msra.mxu0 %v1800
    %1825 = vmatprep.subr.mxu0 0.0
    %1826 = vmatpush1.msra.mxu0 %v1801
    %1827 = vmatprep.subr.mxu0 0.0
    %1828 = vmatpush1.msra.mxu0 %v1802
    %1829 = vmatprep.subr.mxu0 0.0
    %1830 = vmatpush1.msra.mxu0 %v1803
    %1831 = vmatprep.subr.mxu0 0.0
    %1832 = vmatpush1.msra.mxu0 %v1804
    %1833 = vmatprep.subr.mxu0 0.0
    %1834 = vmatpush1.msra.mxu0 %v1805
    %1835 = vmatprep.subr.mxu0 0.0
    %1836 = vmatpush1.msra.mxu0 %v1806
    %1837 = vmatprep.subr.mxu0 0.0
    %1838 = vmatpush1.msra.mxu0 %v1807
    %1839 = vmatprep.subr.mxu0 0.0
    %1840 = vmatpush1.msra.mxu0 %v1808
    %1841 = vmatprep.subr.mxu0 0.0
    %1842 = vmatpush1.msra.mxu0 %v1809
    %1843 = vmatprep.subr.mxu0 0.0
    %1844 = vmatpush1.msra.mxu0 %v1810
    %1845 = vmatprep.subr.mxu0 0.0
    %1846 = vmatpush1.msra.mxu0 %v1811
    %1847 = vmatprep.subr.mxu0 0.0
    %1848 = vmatpush1.msra.mxu0 %v1812
    %1849 = vmatprep.subr.mxu0 0.0
    %1850 = vmatpush1.msra.mxu0 0.0
    %1851 = vmatprep.subr.mxu0 0.0
    %1852 = vmatpush1.msra.mxu0 0.0
    %1853 = vmatprep.subr.mxu0 0.0
    %1854 = vmatpush1.msra.mxu0 0.0
    %1855 = vmatprep.subr.mxu0 0.0
    %1856 = vmatpush1.msra.mxu0 0.0
    %1857 = vmatprep.subr.mxu0 0.0
    %1858 = vmatpush1.msra.mxu0 0.0
    %1859 = vmatprep.subr.mxu0 0.0
    %1860 = vmatpush1.msra.mxu0 0.0
    %1861 = vmatprep.subr.mxu0 0.0
    %1862 = vmatpush1.msra.mxu0 0.0
    %1863 = vmatprep.subr.mxu0 0.0
    %1864 = vmatpush1.msra.mxu0 0.0
    %1865 = vmatprep.subr.mxu0 0.0
    %1866 = vmatpush1.msra.mxu0 0.0
    %1867 = vmatprep.subr.mxu0 0.0
    %1868 = vmatpush1.msra.mxu0 0.0
    %1869 = vmatprep.subr.mxu0 0.0
    %1870 = vmatpush1.msra.mxu0 0.0
    %1871 = vmatprep.subr.mxu0 0.0
    %1872 = vmatpush1.msra.mxu0 0.0
    %1873 = vmatprep.subr.mxu0 0.0
    %1874 = vmatpush1.msra.mxu0 0.0
    %1875 = vmatprep.subr.mxu0 0.0
    %1876 = vmatpush1.msra.mxu0 0.0
    %1877 = vmatprep.subr.mxu0 0.0
    %1878 = vmatpush1.msra.mxu0 0.0
    %1879 = vmatprep.subr.mxu0 0.0
    %1880 = vmatpush1.msra.mxu0 0.0
    %1881 = vmatprep.mubr.f32.mxu0 0.0
    %1882 = vmatmul.mubr.f32.gmra.mrb[0].mxu0 %v1795
    %v1883 = vpop.f32.mrb[0].mxu0
    %v1884 = vadd.f32 %v1816, %v1883
    %v1885 = vpop.f32.mrb[0].mxu0
    %1886 = vdwg.mxu0
    %v1887 = vtanh.pop %v1884
    %s1888 = scalar_lea.vmem [#allocation7], 256
    %v1889 = vld [vmem:[%s1888] sm:$0xff]
    %v1890 = vld [vmem:[%s1888 + $0x8] sm:$0xff]
    %v1891 = vld [vmem:[%s1888 + $0x10] sm:$0xff]
    %v1892 = vld [vmem:[%s1888 + $0x18] sm:$0xff]
    %v1893 = vld [vmem:[%s1888 + $0x20] sm:$0xff]
    %v1894 = vld [vmem:[%s1888 + $0x28] sm:$0xff]
    %v1895 = vld [vmem:[%s1888 + $0x30] sm:$0xff]
    %v1896 = vld [vmem:[%s1888 + $0x38] sm:$0xff]
    %v1897 = vld [vmem:[%s1888 + $0x40] sm:$0xff]
    %v1898 = vld [vmem:[%s1888 + $0x48] sm:$0xff]
    %v1899 = vld [vmem:[%s1888 + $0x50] sm:$0xff]
    %v1900 = vld [vmem:[%s1888 + $0x58] sm:$0xff]
    %v1901 = vld [vmem:[%s1888 + $0x60] sm:$0xff]
    %v1902 = vld [vmem:[%s1888 + $0x68] sm:$0xff]
    %v1903 = vld [vmem:[%s1888 + $0x70] sm:$0xff]
    %v1904 = vld [vmem:[%s1888 + $0x78] sm:$0xff]
    %v1905 = vlaneseq
    %v1906 = vshrl.u32 %v1905, 7
    %v1907 = vsub.s32 0, %v1906
    %v1908 = vrot.slane %v75, %v1907
    %1909 = vmatprep.subr.mxu0 0.0
    %1910 = vmatpush1.msra.mxu0 %v1889
    %1911 = vmatprep.subr.mxu0 0.0
    %1912 = vmatpush1.msra.mxu0 %v1890
    %1913 = vmatprep.subr.mxu0 0.0
    %1914 = vmatpush1.msra.mxu0 %v1891
    %1915 = vmatprep.subr.mxu0 0.0
    %1916 = vmatpush1.msra.mxu0 %v1892
    %1917 = vmatprep.subr.mxu0 0.0
    %1918 = vmatpush1.msra.mxu0 %v1893
    %1919 = vmatprep.subr.mxu0 0.0
    %1920 = vmatpush1.msra.mxu0 %v1894
    %1921 = vmatprep.subr.mxu0 0.0
    %1922 = vmatpush1.msra.mxu0 %v1895
    %1923 = vmatprep.subr.mxu0 0.0
    %1924 = vmatpush1.msra.mxu0 %v1896
    %1925 = vmatprep.subr.mxu0 0.0
    %1926 = vmatpush1.msra.mxu0 %v1897
    %1927 = vmatprep.subr.mxu0 0.0
    %1928 = vmatpush1.msra.mxu0 %v1898
    %1929 = vmatprep.subr.mxu0 0.0
    %1930 = vmatpush1.msra.mxu0 %v1899
    %1931 = vmatprep.subr.mxu0 0.0
    %1932 = vmatpush1.msra.mxu0 %v1900
    %1933 = vmatprep.subr.mxu0 0.0
    %1934 = vmatpush1.msra.mxu0 %v1901
    %1935 = vmatprep.subr.mxu0 0.0
    %1936 = vmatpush1.msra.mxu0 %v1902
    %1937 = vmatprep.subr.mxu0 0.0
    %1938 = vmatpush1.msra.mxu0 %v1903
    %1939 = vmatprep.subr.mxu0 0.0
    %1940 = vmatpush1.msra.mxu0 %v1904
    %1941 = vmatprep.subr.mxu0 0.0
    %1942 = vmatpush1.msra.mxu0 0.0
    %1943 = vmatprep.subr.mxu0 0.0
    %1944 = vmatpush1.msra.mxu0 0.0
    %1945 = vmatprep.subr.mxu0 0.0
    %1946 = vmatpush1.msra.mxu0 0.0
    %1947 = vmatprep.subr.mxu0 0.0
    %1948 = vmatpush1.msra.mxu0 0.0
    %1949 = vmatprep.subr.mxu0 0.0
    %1950 = vmatpush1.msra.mxu0 0.0
    %1951 = vmatprep.subr.mxu0 0.0
    %1952 = vmatpush1.msra.mxu0 0.0
    %1953 = vmatprep.subr.mxu0 0.0
    %1954 = vmatpush1.msra.mxu0 0.0
    %1955 = vmatprep.subr.mxu0 0.0
    %1956 = vmatpush1.msra.mxu0 0.0
    %1957 = vmatprep.subr.mxu0 0.0
    %1958 = vmatpush1.msra.mxu0 0.0
    %1959 = vmatprep.subr.mxu0 0.0
    %1960 = vmatpush1.msra.mxu0 0.0
    %1961 = vmatprep.subr.mxu0 0.0
    %1962 = vmatpush1.msra.mxu0 0.0
    %1963 = vmatprep.subr.mxu0 0.0
    %1964 = vmatpush1.msra.mxu0 0.0
    %1965 = vmatprep.subr.mxu0 0.0
    %1966 = vmatpush1.msra.mxu0 0.0
    %1967 = vmatprep.subr.mxu0 0.0
    %1968 = vmatpush1.msra.mxu0 0.0
    %1969 = vmatprep.subr.mxu0 0.0
    %1970 = vmatpush1.msra.mxu0 0.0
    %1971 = vmatprep.subr.mxu0 0.0
    %1972 = vmatpush1.msra.mxu0 0.0
    %1973 = vmatprep.mubr.f32.mxu0 0.0
    %1974 = vmatmul.mubr.f32.gmra.mrb[0].mxu0 %v1887
    %v1975 = vpop.f32.mrb[0].mxu0
    %v1976 = vadd.f32 %v1908, %v1975
    %v1977 = vpop.f32.mrb[0].mxu0
    %1978 = vdwg.mxu0
    %v1979 = vlaneseq
    %v1980 = vand.u32 %v1979, 127
    %vm1981 = vcmp.lt.s32.totalorder %v1980, 64
    %v1982 = vtanh.pop %v1976
    %v1983 = vsel %vm1981, 1, 0
    %vm1984 = vcmp.eq.s32.totalorder %v1983, 1
    %v1985 = vsel %vm1984, %v1982, %v1976
    %v1986 = vld [vmem:[%s7] sm:$0x3]
    %v1987 = vlaneseq
    %v1988 = vshrl.u32 %v1987, 7
    %v1989 = vsub.s32 0, %v1988
    %v1990 = vrot.slane %v76, %v1989
    %v1991 = vmul.f32 %v1990, %v1986
    %v1992 = vadd.f32 %v1985, %v1991
    %v1993 = vmul.f32 %v1991, %v1991
    %v1994 = vlaneseq
    %v1995 = vshrl.u32 %v1994, 7
    %v1996 = vsub.s32 0, %v1995
    %v1997 = vrot.slane %v77, %v1996
    %v1998 = vmul.f32 %v1993, %v1997
    %vm1999 = vcmask 1041408
    %v2000 = vsel %vm1999, %v1998, 0.0
    %2001 = vadd.xlane.f32.xlu0 %v2000
    %v2002 = vpop.xlane.xlu0 %2001
    %vm2003 = vcmp.eq.s32.totalorder %v1980, 127
    %v2004 = vmul.f32 %v2002, -0.5
    %v2005 = vsel %vm2003, 1, 0
    %vm2006 = vcmp.eq.s32.totalorder %v2005, 1
    %v2007 = vsel %vm2006, %v2004, 0.0
    %v2008 = vadd.f32 %v1992, %v2007
    %2009 = vst [vmem:[%s8] sm:$0x3] %v2008
    // Predicated region
    $region46: #{actor_critic_act.1} parent=1 // pred_check
      _
    $region47: #{actor_critic_act.1} parent=1 // pred_check_branch
      %2011 = sbr.rel (0) target = $region49
    $region48: #{actor_critic_act.1} parent=1 // pred_region
      _
    $region49: #{actor_critic_act.1} parent=1 // pred_fallthru
      _
    // Predicated region
    $region50: #{actor_critic_act.1} parent=1 // pred_check
      _
    $region51: #{actor_critic_act.1} parent=1 // pred_check_branch
      %2013 = sbr.rel (0) target = $region53
    $region52: #{actor_critic_act.1} parent=1 // pred_region
      _
    $region53: #{actor_critic_act.1} parent=1 // pred_fallthru
      _
    %2014 = vsyncpa [#allocation4], 1
    %2015 = vsyncpa [#allocation6], 1

</llo_original>
